<compile_context>
chip_gen: v7x
topology: tpu7x:2x2x1
jax: 0.10.0
libtpu: 0.0.40
codegen_flags: <defaults>
</compile_context>

<pallas_src>
import functools

import numpy as np
import jax
import jax.numpy as jnp
from jax.experimental import pallas as pl
from jax.experimental.pallas import tpu as pltpu

K_SIZE = 4
PAD = K_SIZE - 1          # = 3
SIZE_HIDDEN = 2           # hidden channel multiplier


# ----------------------------------------------------------------------------
# Wrapper-side weight packing (done once, outside the kernel).
# PyTorch Conv1d weight layout: (C_out, C_in, K);  out[o,t] = sum_{i,k} w[o,i,k]*x[i,t+k]
# ----------------------------------------------------------------------------
def _blockdiag_pair(wa, wb):
    """Two convs with *different* inputs fused: inputs concatenated along
    channels, outputs concatenated along channels, block-diagonal weights.
    (co, ci, K) x2 -> (2*co, K*2*ci) with column index = k*2*ci + j."""
    co, ci, k = wa.shape
    top = jnp.concatenate([wa, jnp.zeros_like(wa)], axis=1)   # rows: group-a outputs
    bot = jnp.concatenate([jnp.zeros_like(wb), wb], axis=1)   # rows: group-b outputs
    w = jnp.concatenate([top, bot], axis=0)                   # (2co, 2ci, K)
    return jnp.transpose(w, (0, 2, 1)).reshape(2 * co, k * 2 * ci)


def _stack_out(wa, wb):
    """Two convs sharing the *same* input fused: outputs stacked.
    (co, ci, K) x2 -> (2*co, K*ci) with column index = k*ci + i."""
    co, ci, k = wa.shape
    w = jnp.concatenate([wa, wb], axis=0)                     # (2co, ci, K)
    return jnp.transpose(w, (0, 2, 1)).reshape(2 * co, k * ci)


# ----------------------------------------------------------------------------
# In-kernel helpers (channel-major: (channels, time), time on the lane axis).
# ----------------------------------------------------------------------------
def _pad_replicate(x):            # ReplicationPad1d(3)
    l = x[:, :1]
    r = x[:, -1:]
    return jnp.concatenate([l, l, l, x, r, r, r], axis=1)


def _pad_reflect(x):              # ReflectionPad1d(3), needs T >= 4
    return jnp.concatenate(
        [x[:, 3:4], x[:, 2:3], x[:, 1:2], x,
         x[:, -2:-1], x[:, -3:-2], x[:, -4:-3]], axis=1)


def _im2col(x, t_out):
    """(R, T_in) -> (K*R, t_out): K shifted views stacked along sublanes,
    row index = k*R + r, matching the packed weight column ordering."""
    return jnp.concatenate([x[:, k:k + t_out] for k in range(K_SIZE)], axis=0)


def _leaky(h):
    return jnp.where(h > 0, h, 0.01 * h)     # LeakyReLU(0.01); Dropout(0)=identity


# ----------------------------------------------------------------------------
# Fused forward kernel: one grid step = `bb` batch elements, both lifting steps.
# x_ref : (bb, T, 2C)  -- row t holds [x[2t, :] | x[2t+1, :]]  (even | odd)
# weights already packed:  w1d (2Ch, K*2C)  w2d (2C, K*2Ch)   [phi | P, block-diag]
#                          w1c (2Ch, K*C)   w2c (2C, K*2Ch)   [psi | U]
# outputs c_ref, d_ref : (bb, C, T)   (module's NCW layout)
# ----------------------------------------------------------------------------
def _lifting_kernel(x_ref, w1d_ref, b1d_ref, w2d_ref, b2d_ref,
                    w1c_ref, b1c_ref, w2c_ref, b2c_ref,
                    c_ref, d_ref, *, bb, t, c):
    T, C = t, c
    T1 = T + PAD
    w1d = w1d_ref[...]; b1d = b1d_ref[...]
    w2d = w2d_ref[...]; b2d = b2d_ref[...]
    w1c = w1c_ref[...]; b1c = b1c_ref[...]
    w2c = w2c_ref[...]; b2c = b2c_ref[...]

    for b in range(bb):                              # static unroll, bb small
        xt = x_ref[b].T                              # (2C, T): [even chans | odd chans]
        xe = xt[:C, :]                               # (C, T)  x_even (channel-major)
        xo = xt[C:, :]                               # (C, T)  x_odd

        # ---- stage 1:  d = x_odd * exp(phi(rep(xe))) - P(refl(xe)) ----------
        x1 = jnp.concatenate([_pad_replicate(xe), _pad_reflect(xe)], axis=0)  # (2C, T+6)
        h1 = _leaky(jnp.dot(w1d, _im2col(x1, T1),
                            preferred_element_type=jnp.float32) + b1d)        # (2Ch, T1)
        y1 = jnp.tanh(jnp.dot(w2d, _im2col(h1, T),
                              preferred_element_type=jnp.float32) + b2d)      # (2C, T)
        d = xo * jnp.exp(y1[:C, :]) - y1[C:, :]
        d_ref[b] = d

        # ---- stage 2:  c = x_even * exp(psi(rep(d))) + U(rep(d)) ------------
        h2 = _leaky(jnp.dot(w1c, _im2col(_pad_replicate(d), T1),
                            preferred_element_type=jnp.float32) + b1c)        # (2Ch, T1)
        y2 = jnp.tanh(jnp.dot(w2c, _im2col(h2, T),
                              preferred_element_type=jnp.float32) + b2c)      # (2C, T)
        c_ref[b] = xe * jnp.exp(y2[:C, :]) + y2[C:, :]


def _pick_block_b(batch, cap=8):
    bb = min(batch, cap)
    while batch % bb:
        bb -= 1
    return bb


# ----------------------------------------------------------------------------
# Full forward.  x : (B, L, C)  ->  (c, d), each (B, C, L_even//2)
# ----------------------------------------------------------------------------
def lifting_scheme_forward(x, params, block_b=None):
    B, L, C = x.shape
    x = x.astype(jnp.float32)
    if L % 2 != 0:
        x = jnp.concatenate([x, x[:, -1:, :]], axis=1)
        L += 1
    T = L // 2
    if T < K_SIZE:
        raise ValueError("Reflection padding (pad=3) requires L//2 >= 4.")
    xr = x.reshape(B, T, 2 * C)          # free metadata reshape: packs (even|odd) per row

    w1_phi, b1_phi, w2_phi, b2_phi = params["phi"]
    w1_P,   b1_P,   w2_P,   b2_P   = params["P"]
    w1_psi, b1_psi, w2_psi, b2_psi = params["psi"]
    w1_U,   b1_U,   w2_U,   b2_U   = params["U"]

    # Stage-1 fused weights (phi on replication-pad | P on reflection-pad).
    w1d = _blockdiag_pair(w1_phi, w1_P)                 # (2Ch, K*2C)
    b1d = jnp.concatenate([b1_phi, b1_P], axis=0)       # (2Ch, 1)
    w2d = _blockdiag_pair(w2_phi, w2_P)                 # (2C, K*2Ch)
    b2d = jnp.concatenate([b2_phi, b2_P], axis=0)       # (2C, 1)
    # Stage-2 fused weights (psi | U, shared input d).
    w1c = _stack_out(w1_psi, w1_U)                      # (2Ch, K*C)
    b1c = jnp.concatenate([b1_psi, b1_U], axis=0)
    w2c = _blockdiag_pair(w2_psi, w2_U)                 # (2C, K*2Ch)
    b2c = jnp.concatenate([b2_psi, b2_U], axis=0)

    bb = _pick_block_b(B) if block_b is None else block_b
    assert B % bb == 0

    kern = functools.partial(_lifting_kernel, bb=bb, t=T, c=C)
    full2d = lambda a: pl.BlockSpec(a.shape, lambda i: (0, 0))

    c_out, d_out = pl.pallas_call(
        kern,
        out_shape=(jax.ShapeDtypeStruct((B, C, T), jnp.float32),
                   jax.ShapeDtypeStruct((B, C, T), jnp.float32)),
        grid=(B // bb,),
        in_specs=[
            pl.BlockSpec((bb, T, 2 * C), lambda i: (i, 0, 0)),
            full2d(w1d), full2d(b1d), full2d(w2d), full2d(b2d),
            full2d(w1c), full2d(b1c), full2d(w2c), full2d(b2c),
        ],
        out_specs=[
            pl.BlockSpec((bb, C, T), lambda i: (i, 0, 0)),
            pl.BlockSpec((bb, C, T), lambda i: (i, 0, 0)),
        ],
        compiler_params=pltpu.CompilerParams(
            dimension_semantics=("parallel",)),   # batch elements independent
    )(xr, w1d, b1d, w2d, b2d, w1c, b1c, w2c, b2c)
    return c_out, d_out


# ----------------------------------------------------------------------------
# Deterministic parameter setup.  Each of phi/psi/P/U:
#   Conv1d(C, 2C, 4) + Conv1d(2C, C, 4)
# ----------------------------------------------------------------------------
def init_params(key, in_planes):
    c = in_planes
    ch = in_planes * SIZE_HIDDEN
    params = {}
    for name in ("phi", "psi", "P", "U"):
        key, k1, k2, k3, k4 = jax.random.split(key, 5)
        w1 = jax.random.normal(k1, (ch, c, K_SIZE), jnp.float32) * 0.1
        b1 = jax.random.normal(k2, (ch, 1), jnp.float32) * 0.1
        w2 = jax.random.normal(k3, (c, ch, K_SIZE), jnp.float32) * 0.1
        b2 = jax.random.normal(k4, (c, 1), jnp.float32) * 0.1
        params[name] = (w1, b1, w2, b2)
    return params


# ----------------------------------------------------------------------------
# Plain-JAX reference (per-tap einsums + jnp.pad) for a sanity check.
# ----------------------------------------------------------------------------
def _net_ref(xp, w1, b1, w2, b2, t_out):
    t1 = t_out + PAD
    h = sum(jnp.einsum("oi,bit->bot", w1[:, :, k], xp[:, :, k:k + t1])
            for k in range(K_SIZE)) + b1[None]
    h = jnp.where(h > 0, h, 0.01 * h)
    y = sum(jnp.einsum("oi,bit->bot", w2[:, :, k], h[:, :, k:k + t_out])
            for k in range(K_SIZE)) + b2[None]
    return jnp.tanh(y)


def lifting_scheme_ref(x, params):
    B, L, C = x.shape
    if L % 2 != 0:
        x = jnp.concatenate([x, x[:, -1:, :]], axis=1)
    x_even = jnp.transpose(x[:, ::2, :], (0, 2, 1)).astype(jnp.float32)
    x_odd = jnp.transpose(x[:, 1::2, :], (0, 2, 1)).astype(jnp.float32)
    T = x_even.shape[-1]
    pad_cfg = ((0, 0), (0, 0), (PAD, PAD))
    phi = _net_ref(jnp.pad(x_even, pad_cfg, mode="edge"), *params["phi"], t_out=T)
    P = _net_ref(jnp.pad(x_even, pad_cfg, mode="reflect"), *params["P"], t_out=T)
    d = x_odd * jnp.exp(phi) - P
    psi = _net_ref(jnp.pad(d, pad_cfg, mode="edge"), *params["psi"], t_out=T)
    U = _net_ref(jnp.pad(d, pad_cfg, mode="edge"), *params["U"], t_out=T)
    c = x_even * jnp.exp(psi) + U
    return c, d


if __name__ == "__main__":
    key = jax.random.PRNGKey(0)
    key, kx, kp = jax.random.split(key, 3)

    B, L, C = 2, 16, 4                      # (batch, seq_len, in_planes)
    x = jax.random.normal(kx, (B, L, C), jnp.float32)
    params = init_params(kp, C)

    c, d = jax.jit(lifting_scheme_forward)(x, params)
    jax.block_until_ready((c, d))

    c_ref, d_ref = lifting_scheme_ref(x, params)
    # Tolerance covers MXU default-precision differences between the fused
    # single-contraction kernel and the per-tap reference decomposition.
    np.testing.assert_allclose(np.asarray(d), np.asarray(d_ref), atol=5e-3, rtol=5e-3)
    np.testing.assert_allclose(np.asarray(c), np.asarray(c_ref), atol=5e-3, rtol=5e-3)

    assert c.shape == (B, C, L // 2) and d.shape == (B, C, L // 2)
    print("KERNEL_OK")
</pallas_src>

<mosaic_0001>
module attributes {stable_mosaic.version = 11 : i64} {
  func.func @_lifting_kernel(%arg0: i32, %arg1: memref<2x8x8xf32, #tpu.memory_space<vmem>>, %arg2: memref<16x32xf32, #tpu.memory_space<vmem>>, %arg3: memref<16x1xf32, #tpu.memory_space<vmem>>, %arg4: memref<8x64xf32, #tpu.memory_space<vmem>>, %arg5: memref<8x1xf32, #tpu.memory_space<vmem>>, %arg6: memref<16x16xf32, #tpu.memory_space<vmem>>, %arg7: memref<16x1xf32, #tpu.memory_space<vmem>>, %arg8: memref<8x64xf32, #tpu.memory_space<vmem>>, %arg9: memref<8x1xf32, #tpu.memory_space<vmem>>, %arg10: memref<2x4x8xf32, #tpu.memory_space<vmem>>, %arg11: memref<2x4x8xf32, #tpu.memory_space<vmem>>) attributes {dimension_semantics = [#tpu.dimension_semantics<parallel>], iteration_bounds = array<i64: 1>, scalar_prefetch = 0 : i64, scratch_operands = 0 : i64, tpu.core_type = #tpu.core_type<tc>, window_params = [{transform_indices = @transform_0, window_bounds = array<i64: 2, 8, 8>}, {pipeline_mode = #tpu.pipeline_mode<synchronous>, transform_indices = @transform_1, window_bounds = array<i64: 16, 32>}, {pipeline_mode = #tpu.pipeline_mode<synchronous>, transform_indices = @transform_2, window_bounds = array<i64: 16, 1>}, {pipeline_mode = #tpu.pipeline_mode<synchronous>, transform_indices = @transform_3, window_bounds = array<i64: 8, 64>}, {pipeline_mode = #tpu.pipeline_mode<synchronous>, transform_indices = @transform_4, window_bounds = array<i64: 8, 1>}, {pipeline_mode = #tpu.pipeline_mode<synchronous>, transform_indices = @transform_5, window_bounds = array<i64: 16, 16>}, {pipeline_mode = #tpu.pipeline_mode<synchronous>, transform_indices = @transform_6, window_bounds = array<i64: 16, 1>}, {pipeline_mode = #tpu.pipeline_mode<synchronous>, transform_indices = @transform_7, window_bounds = array<i64: 8, 64>}, {pipeline_mode = #tpu.pipeline_mode<synchronous>, transform_indices = @transform_8, window_bounds = array<i64: 8, 1>}, {transform_indices = @transform_9, window_bounds = array<i64: 2, 4, 8>}, {transform_indices = @transform_10, window_bounds = array<i64: 2, 4, 8>}]} {
    %c0 = arith.constant 0 : index
    %c0_0 = arith.constant 0 : index
    %0 = vector.load %arg2[%c0, %c0_0] : memref<16x32xf32, #tpu.memory_space<vmem>>, vector<16x32xf32>
    %c0_1 = arith.constant 0 : index
    %c0_2 = arith.constant 0 : index
    %1 = vector.load %arg3[%c0_1, %c0_2] : memref<16x1xf32, #tpu.memory_space<vmem>>, vector<16x1xf32>
    %c0_3 = arith.constant 0 : index
    %c0_4 = arith.constant 0 : index
    %2 = vector.load %arg4[%c0_3, %c0_4] : memref<8x64xf32, #tpu.memory_space<vmem>>, vector<8x64xf32>
    %c0_5 = arith.constant 0 : index
    %c0_6 = arith.constant 0 : index
    %3 = vector.load %arg5[%c0_5, %c0_6] : memref<8x1xf32, #tpu.memory_space<vmem>>, vector<8x1xf32>
    %c0_7 = arith.constant 0 : index
    %c0_8 = arith.constant 0 : index
    %4 = vector.load %arg6[%c0_7, %c0_8] : memref<16x16xf32, #tpu.memory_space<vmem>>, vector<16x16xf32>
    %c0_9 = arith.constant 0 : index
    %c0_10 = arith.constant 0 : index
    %5 = vector.load %arg7[%c0_9, %c0_10] : memref<16x1xf32, #tpu.memory_space<vmem>>, vector<16x1xf32>
    %c0_11 = arith.constant 0 : index
    %c0_12 = arith.constant 0 : index
    %6 = vector.load %arg8[%c0_11, %c0_12] : memref<8x64xf32, #tpu.memory_space<vmem>>, vector<8x64xf32>
    %c0_13 = arith.constant 0 : index
    %c0_14 = arith.constant 0 : index
    %7 = vector.load %arg9[%c0_13, %c0_14] : memref<8x1xf32, #tpu.memory_space<vmem>>, vector<8x1xf32>
    %c0_15 = arith.constant 0 : index
    %c0_16 = arith.constant 0 : index
    %c0_17 = arith.constant 0 : index
    %8 = vector.load %arg1[%c0_15, %c0_16, %c0_17] : memref<2x8x8xf32, #tpu.memory_space<vmem>>, vector<1x8x8xf32>
    %9 = vector.shape_cast %8 : vector<1x8x8xf32> to vector<8x8xf32>
    %10 = tpu.transpose %9, [1, 0] : vector<8x8xf32> -> vector<8x8xf32>
    %11 = vector.extract_strided_slice %10 {offsets = [0, 0], sizes = [4, 8], strides = [1, 1]} : vector<8x8xf32> to vector<4x8xf32>
    %12 = vector.extract_strided_slice %10 {offsets = [4, 0], sizes = [4, 8], strides = [1, 1]} : vector<8x8xf32> to vector<4x8xf32>
    %13 = vector.extract_strided_slice %11 {offsets = [0, 0], sizes = [4, 1], strides = [1, 1]} : vector<4x8xf32> to vector<4x1xf32>
    %14 = vector.extract_strided_slice %11 {offsets = [0, 7], sizes = [4, 1], strides = [1, 1]} : vector<4x8xf32> to vector<4x1xf32>
    %15 = tpu.concatenate %13, %13, %13, %11, %14, %14, %14 in 1 : vector<4x1xf32>, vector<4x1xf32>, vector<4x1xf32>, vector<4x8xf32>, vector<4x1xf32>, vector<4x1xf32>, vector<4x1xf32> -> vector<4x14xf32>
    %16 = vector.extract_strided_slice %11 {offsets = [0, 3], sizes = [4, 1], strides = [1, 1]} : vector<4x8xf32> to vector<4x1xf32>
    %17 = vector.extract_strided_slice %11 {offsets = [0, 2], sizes = [4, 1], strides = [1, 1]} : vector<4x8xf32> to vector<4x1xf32>
    %18 = vector.extract_strided_slice %11 {offsets = [0, 1], sizes = [4, 1], strides = [1, 1]} : vector<4x8xf32> to vector<4x1xf32>
    %19 = vector.extract_strided_slice %11 {offsets = [0, 6], sizes = [4, 1], strides = [1, 1]} : vector<4x8xf32> to vector<4x1xf32>
    %20 = vector.extract_strided_slice %11 {offsets = [0, 5], sizes = [4, 1], strides = [1, 1]} : vector<4x8xf32> to vector<4x1xf32>
    %21 = vector.extract_strided_slice %11 {offsets = [0, 4], sizes = [4, 1], strides = [1, 1]} : vector<4x8xf32> to vector<4x1xf32>
    %22 = tpu.concatenate %16, %17, %18, %11, %19, %20, %21 in 1 : vector<4x1xf32>, vector<4x1xf32>, vector<4x1xf32>, vector<4x8xf32>, vector<4x1xf32>, vector<4x1xf32>, vector<4x1xf32> -> vector<4x14xf32>
    %23 = tpu.concatenate %15, %22 in 0 : vector<4x14xf32>, vector<4x14xf32> -> vector<8x14xf32>
    %24 = vector.extract_strided_slice %23 {offsets = [0, 0], sizes = [8, 11], strides = [1, 1]} : vector<8x14xf32> to vector<8x11xf32>
    %25 = vector.extract_strided_slice %23 {offsets = [0, 1], sizes = [8, 11], strides = [1, 1]} : vector<8x14xf32> to vector<8x11xf32>
    %26 = vector.extract_strided_slice %23 {offsets = [0, 2], sizes = [8, 11], strides = [1, 1]} : vector<8x14xf32> to vector<8x11xf32>
    %27 = vector.extract_strided_slice %23 {offsets = [0, 3], sizes = [8, 11], strides = [1, 1]} : vector<8x14xf32> to vector<8x11xf32>
    %28 = tpu.concatenate %24, %25, %26, %27 in 0 : vector<8x11xf32>, vector<8x11xf32>, vector<8x11xf32>, vector<8x11xf32> -> vector<32x11xf32>
    %cst = arith.constant dense<0.000000e+00> : vector<16x11xf32>
    %29 = tpu.matmul %0, %28, %cst {dimension_numbers = #tpu.dot_dimension_numbers<[1], [0], [0], [1], [0, 0, 1, 1], [], []>} : vector<16x32xf32>, vector<32x11xf32>, vector<16x11xf32> -> vector<16x11xf32>
    %30 = vector.broadcast %1 : vector<16x1xf32> to vector<16x11xf32>
    %31 = arith.addf %29, %30 : vector<16x11xf32>
    %cst_18 = arith.constant 0.000000e+00 : f32
    %32 = vector.broadcast %cst_18 : f32 to vector<16x11xf32>
    %33 = arith.cmpf ogt, %31, %32 : vector<16x11xf32>
    %cst_19 = arith.constant 0.00999999977 : f32
    %34 = vector.broadcast %cst_19 : f32 to vector<16x11xf32>
    %35 = arith.mulf %34, %31 : vector<16x11xf32>
    %36 = arith.select %33, %31, %35 : vector<16x11xi1>, vector<16x11xf32>
    %37 = vector.extract_strided_slice %36 {offsets = [0, 0], sizes = [16, 8], strides = [1, 1]} : vector<16x11xf32> to vector<16x8xf32>
    %38 = vector.extract_strided_slice %36 {offsets = [0, 1], sizes = [16, 8], strides = [1, 1]} : vector<16x11xf32> to vector<16x8xf32>
    %39 = vector.extract_strided_slice %36 {offsets = [0, 2], sizes = [16, 8], strides = [1, 1]} : vector<16x11xf32> to vector<16x8xf32>
    %40 = vector.extract_strided_slice %36 {offsets = [0, 3], sizes = [16, 8], strides = [1, 1]} : vector<16x11xf32> to vector<16x8xf32>
    %41 = tpu.concatenate %37, %38, %39, %40 in 0 : vector<16x8xf32>, vector<16x8xf32>, vector<16x8xf32>, vector<16x8xf32> -> vector<64x8xf32>
    %cst_20 = arith.constant dense<0.000000e+00> : vector<8x8xf32>
    %42 = tpu.matmul %2, %41, %cst_20 {dimension_numbers = #tpu.dot_dimension_numbers<[1], [0], [0], [1], [0, 0, 1, 1], [], []>} : vector<8x64xf32>, vector<64x8xf32>, vector<8x8xf32> -> vector<8x8xf32>
    %43 = vector.broadcast %3 : vector<8x1xf32> to vector<8x8xf32>
    %44 = arith.addf %42, %43 : vector<8x8xf32>
    %45 = math.tanh %44 : vector<8x8xf32>
    %46 = vector.extract_strided_slice %45 {offsets = [0, 0], sizes = [4, 8], strides = [1, 1]} : vector<8x8xf32> to vector<4x8xf32>
    %47 = math.exp %46 : vector<4x8xf32>
    %48 = arith.mulf %12, %47 : vector<4x8xf32>
    %49 = vector.extract_strided_slice %45 {offsets = [4, 0], sizes = [4, 8], strides = [1, 1]} : vector<8x8xf32> to vector<4x8xf32>
    %50 = arith.subf %48, %49 : vector<4x8xf32>
    %c0_21 = arith.constant 0 : index
    %c0_22 = arith.constant 0 : index
    %c0_23 = arith.constant 0 : index
    %51 = vector.load %arg11[%c0_21, %c0_22, %c0_23] : memref<2x4x8xf32, #tpu.memory_space<vmem>>, vector<1x4x8xf32>
    %52 = vector.shape_cast %51 : vector<1x4x8xf32> to vector<4x8xf32>
    %53 = vector.shape_cast %50 : vector<4x8xf32> to vector<1x4x8xf32>
    tpu.vector_store %arg11[%c0_21, %c0_22, %c0_23], %53 {strides = array<i32>} : memref<2x4x8xf32, #tpu.memory_space<vmem>>, vector<1x4x8xf32>,
    %54 = vector.extract_strided_slice %50 {offsets = [0, 0], sizes = [4, 1], strides = [1, 1]} : vector<4x8xf32> to vector<4x1xf32>
    %55 = vector.extract_strided_slice %50 {offsets = [0, 7], sizes = [4, 1], strides = [1, 1]} : vector<4x8xf32> to vector<4x1xf32>
    %56 = tpu.concatenate %54, %54, %54, %50, %55, %55, %55 in 1 : vector<4x1xf32>, vector<4x1xf32>, vector<4x1xf32>, vector<4x8xf32>, vector<4x1xf32>, vector<4x1xf32>, vector<4x1xf32> -> vector<4x14xf32>
    %57 = vector.extract_strided_slice %56 {offsets = [0, 0], sizes = [4, 11], strides = [1, 1]} : vector<4x14xf32> to vector<4x11xf32>
    %58 = vector.extract_strided_slice %56 {offsets = [0, 1], sizes = [4, 11], strides = [1, 1]} : vector<4x14xf32> to vector<4x11xf32>
    %59 = vector.extract_strided_slice %56 {offsets = [0, 2], sizes = [4, 11], strides = [1, 1]} : vector<4x14xf32> to vector<4x11xf32>
    %60 = vector.extract_strided_slice %56 {offsets = [0, 3], sizes = [4, 11], strides = [1, 1]} : vector<4x14xf32> to vector<4x11xf32>
    %61 = tpu.concatenate %57, %58, %59, %60 in 0 : vector<4x11xf32>, vector<4x11xf32>, vector<4x11xf32>, vector<4x11xf32> -> vector<16x11xf32>
    %cst_24 = arith.constant dense<0.000000e+00> : vector<16x11xf32>
    %62 = tpu.matmul %4, %61, %cst_24 {dimension_numbers = #tpu.dot_dimension_numbers<[1], [0], [0], [1], [0, 0, 1, 1], [], []>} : vector<16x16xf32>, vector<16x11xf32>, vector<16x11xf32> -> vector<16x11xf32>
    %63 = vector.broadcast %5 : vector<16x1xf32> to vector<16x11xf32>
    %64 = arith.addf %62, %63 : vector<16x11xf32>
    %cst_25 = arith.constant 0.000000e+00 : f32
    %65 = vector.broadcast %cst_25 : f32 to vector<16x11xf32>
    %66 = arith.cmpf ogt, %64, %65 : vector<16x11xf32>
    %cst_26 = arith.constant 0.00999999977 : f32
    %67 = vector.broadcast %cst_26 : f32 to vector<16x11xf32>
    %68 = arith.mulf %67, %64 : vector<16x11xf32>
    %69 = arith.select %66, %64, %68 : vector<16x11xi1>, vector<16x11xf32>
    %70 = vector.extract_strided_slice %69 {offsets = [0, 0], sizes = [16, 8], strides = [1, 1]} : vector<16x11xf32> to vector<16x8xf32>
    %71 = vector.extract_strided_slice %69 {offsets = [0, 1], sizes = [16, 8], strides = [1, 1]} : vector<16x11xf32> to vector<16x8xf32>
    %72 = vector.extract_strided_slice %69 {offsets = [0, 2], sizes = [16, 8], strides = [1, 1]} : vector<16x11xf32> to vector<16x8xf32>
    %73 = vector.extract_strided_slice %69 {offsets = [0, 3], sizes = [16, 8], strides = [1, 1]} : vector<16x11xf32> to vector<16x8xf32>
    %74 = tpu.concatenate %70, %71, %72, %73 in 0 : vector<16x8xf32>, vector<16x8xf32>, vector<16x8xf32>, vector<16x8xf32> -> vector<64x8xf32>
    %cst_27 = arith.constant dense<0.000000e+00> : vector<8x8xf32>
    %75 = tpu.matmul %6, %74, %cst_27 {dimension_numbers = #tpu.dot_dimension_numbers<[1], [0], [0], [1], [0, 0, 1, 1], [], []>} : vector<8x64xf32>, vector<64x8xf32>, vector<8x8xf32> -> vector<8x8xf32>
    %76 = vector.broadcast %7 : vector<8x1xf32> to vector<8x8xf32>
    %77 = arith.addf %75, %76 : vector<8x8xf32>
    %78 = math.tanh %77 : vector<8x8xf32>
    %79 = vector.extract_strided_slice %78 {offsets = [0, 0], sizes = [4, 8], strides = [1, 1]} : vector<8x8xf32> to vector<4x8xf32>
    %80 = math.exp %79 : vector<4x8xf32>
    %81 = arith.mulf %11, %80 : vector<4x8xf32>
    %82 = vector.extract_strided_slice %78 {offsets = [4, 0], sizes = [4, 8], strides = [1, 1]} : vector<8x8xf32> to vector<4x8xf32>
    %83 = arith.addf %81, %82 : vector<4x8xf32>
    %c0_28 = arith.constant 0 : index
    %c0_29 = arith.constant 0 : index
    %c0_30 = arith.constant 0 : index
    %84 = vector.load %arg10[%c0_28, %c0_29, %c0_30] : memref<2x4x8xf32, #tpu.memory_space<vmem>>, vector<1x4x8xf32>
    %85 = vector.shape_cast %84 : vector<1x4x8xf32> to vector<4x8xf32>
    %86 = vector.shape_cast %83 : vector<4x8xf32> to vector<1x4x8xf32>
    tpu.vector_store %arg10[%c0_28, %c0_29, %c0_30], %86 {strides = array<i32>} : memref<2x4x8xf32, #tpu.memory_space<vmem>>, vector<1x4x8xf32>,
    %c1 = arith.constant 1 : index
    %c0_31 = arith.constant 0 : index
    %c0_32 = arith.constant 0 : index
    %87 = vector.load %arg1[%c1, %c0_31, %c0_32] : memref<2x8x8xf32, #tpu.memory_space<vmem>>, vector<1x8x8xf32>
    %88 = vector.shape_cast %87 : vector<1x8x8xf32> to vector<8x8xf32>
    %89 = tpu.transpose %88, [1, 0] : vector<8x8xf32> -> vector<8x8xf32>
    %90 = vector.extract_strided_slice %89 {offsets = [0, 0], sizes = [4, 8], strides = [1, 1]} : vector<8x8xf32> to vector<4x8xf32>
    %91 = vector.extract_strided_slice %89 {offsets = [4, 0], sizes = [4, 8], strides = [1, 1]} : vector<8x8xf32> to vector<4x8xf32>
    %92 = vector.extract_strided_slice %90 {offsets = [0, 0], sizes = [4, 1], strides = [1, 1]} : vector<4x8xf32> to vector<4x1xf32>
    %93 = vector.extract_strided_slice %90 {offsets = [0, 7], sizes = [4, 1], strides = [1, 1]} : vector<4x8xf32> to vector<4x1xf32>
    %94 = tpu.concatenate %92, %92, %92, %90, %93, %93, %93 in 1 : vector<4x1xf32>, vector<4x1xf32>, vector<4x1xf32>, vector<4x8xf32>, vector<4x1xf32>, vector<4x1xf32>, vector<4x1xf32> -> vector<4x14xf32>
    %95 = vector.extract_strided_slice %90 {offsets = [0, 3], sizes = [4, 1], strides = [1, 1]} : vector<4x8xf32> to vector<4x1xf32>
    %96 = vector.extract_strided_slice %90 {offsets = [0, 2], sizes = [4, 1], strides = [1, 1]} : vector<4x8xf32> to vector<4x1xf32>
    %97 = vector.extract_strided_slice %90 {offsets = [0, 1], sizes = [4, 1], strides = [1, 1]} : vector<4x8xf32> to vector<4x1xf32>
    %98 = vector.extract_strided_slice %90 {offsets = [0, 6], sizes = [4, 1], strides = [1, 1]} : vector<4x8xf32> to vector<4x1xf32>
    %99 = vector.extract_strided_slice %90 {offsets = [0, 5], sizes = [4, 1], strides = [1, 1]} : vector<4x8xf32> to vector<4x1xf32>
    %100 = vector.extract_strided_slice %90 {offsets = [0, 4], sizes = [4, 1], strides = [1, 1]} : vector<4x8xf32> to vector<4x1xf32>
    %101 = tpu.concatenate %95, %96, %97, %90, %98, %99, %100 in 1 : vector<4x1xf32>, vector<4x1xf32>, vector<4x1xf32>, vector<4x8xf32>, vector<4x1xf32>, vector<4x1xf32>, vector<4x1xf32> -> vector<4x14xf32>
    %102 = tpu.concatenate %94, %101 in 0 : vector<4x14xf32>, vector<4x14xf32> -> vector<8x14xf32>
    %103 = vector.extract_strided_slice %102 {offsets = [0, 0], sizes = [8, 11], strides = [1, 1]} : vector<8x14xf32> to vector<8x11xf32>
    %104 = vector.extract_strided_slice %102 {offsets = [0, 1], sizes = [8, 11], strides = [1, 1]} : vector<8x14xf32> to vector<8x11xf32>
    %105 = vector.extract_strided_slice %102 {offsets = [0, 2], sizes = [8, 11], strides = [1, 1]} : vector<8x14xf32> to vector<8x11xf32>
    %106 = vector.extract_strided_slice %102 {offsets = [0, 3], sizes = [8, 11], strides = [1, 1]} : vector<8x14xf32> to vector<8x11xf32>
    %107 = tpu.concatenate %103, %104, %105, %106 in 0 : vector<8x11xf32>, vector<8x11xf32>, vector<8x11xf32>, vector<8x11xf32> -> vector<32x11xf32>
    %cst_33 = arith.constant dense<0.000000e+00> : vector<16x11xf32>
    %108 = tpu.matmul %0, %107, %cst_33 {dimension_numbers = #tpu.dot_dimension_numbers<[1], [0], [0], [1], [0, 0, 1, 1], [], []>} : vector<16x32xf32>, vector<32x11xf32>, vector<16x11xf32> -> vector<16x11xf32>
    %109 = vector.broadcast %1 : vector<16x1xf32> to vector<16x11xf32>
    %110 = arith.addf %108, %109 : vector<16x11xf32>
    %cst_34 = arith.constant 0.000000e+00 : f32
    %111 = vector.broadcast %cst_34 : f32 to vector<16x11xf32>
    %112 = arith.cmpf ogt, %110, %111 : vector<16x11xf32>
    %cst_35 = arith.constant 0.00999999977 : f32
    %113 = vector.broadcast %cst_35 : f32 to vector<16x11xf32>
    %114 = arith.mulf %113, %110 : vector<16x11xf32>
    %115 = arith.select %112, %110, %114 : vector<16x11xi1>, vector<16x11xf32>
    %116 = vector.extract_strided_slice %115 {offsets = [0, 0], sizes = [16, 8], strides = [1, 1]} : vector<16x11xf32> to vector<16x8xf32>
    %117 = vector.extract_strided_slice %115 {offsets = [0, 1], sizes = [16, 8], strides = [1, 1]} : vector<16x11xf32> to vector<16x8xf32>
    %118 = vector.extract_strided_slice %115 {offsets = [0, 2], sizes = [16, 8], strides = [1, 1]} : vector<16x11xf32> to vector<16x8xf32>
    %119 = vector.extract_strided_slice %115 {offsets = [0, 3], sizes = [16, 8], strides = [1, 1]} : vector<16x11xf32> to vector<16x8xf32>
    %120 = tpu.concatenate %116, %117, %118, %119 in 0 : vector<16x8xf32>, vector<16x8xf32>, vector<16x8xf32>, vector<16x8xf32> -> vector<64x8xf32>
    %cst_36 = arith.constant dense<0.000000e+00> : vector<8x8xf32>
    %121 = tpu.matmul %2, %120, %cst_36 {dimension_numbers = #tpu.dot_dimension_numbers<[1], [0], [0], [1], [0, 0, 1, 1], [], []>} : vector<8x64xf32>, vector<64x8xf32>, vector<8x8xf32> -> vector<8x8xf32>
    %122 = vector.broadcast %3 : vector<8x1xf32> to vector<8x8xf32>
    %123 = arith.addf %121, %122 : vector<8x8xf32>
    %124 = math.tanh %123 : vector<8x8xf32>
    %125 = vector.extract_strided_slice %124 {offsets = [0, 0], sizes = [4, 8], strides = [1, 1]} : vector<8x8xf32> to vector<4x8xf32>
    %126 = math.exp %125 : vector<4x8xf32>
    %127 = arith.mulf %91, %126 : vector<4x8xf32>
    %128 = vector.extract_strided_slice %124 {offsets = [4, 0], sizes = [4, 8], strides = [1, 1]} : vector<8x8xf32> to vector<4x8xf32>
    %129 = arith.subf %127, %128 : vector<4x8xf32>
    %c1_37 = arith.constant 1 : index
    %c0_38 = arith.constant 0 : index
    %c0_39 = arith.constant 0 : index
    %130 = vector.load %arg11[%c1_37, %c0_38, %c0_39] : memref<2x4x8xf32, #tpu.memory_space<vmem>>, vector<1x4x8xf32>
    %131 = vector.shape_cast %130 : vector<1x4x8xf32> to vector<4x8xf32>
    %132 = vector.shape_cast %129 : vector<4x8xf32> to vector<1x4x8xf32>
    tpu.vector_store %arg11[%c1_37, %c0_38, %c0_39], %132 {strides = array<i32>} : memref<2x4x8xf32, #tpu.memory_space<vmem>>, vector<1x4x8xf32>,
    %133 = vector.extract_strided_slice %129 {offsets = [0, 0], sizes = [4, 1], strides = [1, 1]} : vector<4x8xf32> to vector<4x1xf32>
    %134 = vector.extract_strided_slice %129 {offsets = [0, 7], sizes = [4, 1], strides = [1, 1]} : vector<4x8xf32> to vector<4x1xf32>
    %135 = tpu.concatenate %133, %133, %133, %129, %134, %134, %134 in 1 : vector<4x1xf32>, vector<4x1xf32>, vector<4x1xf32>, vector<4x8xf32>, vector<4x1xf32>, vector<4x1xf32>, vector<4x1xf32> -> vector<4x14xf32>
    %136 = vector.extract_strided_slice %135 {offsets = [0, 0], sizes = [4, 11], strides = [1, 1]} : vector<4x14xf32> to vector<4x11xf32>
    %137 = vector.extract_strided_slice %135 {offsets = [0, 1], sizes = [4, 11], strides = [1, 1]} : vector<4x14xf32> to vector<4x11xf32>
    %138 = vector.extract_strided_slice %135 {offsets = [0, 2], sizes = [4, 11], strides = [1, 1]} : vector<4x14xf32> to vector<4x11xf32>
    %139 = vector.extract_strided_slice %135 {offsets = [0, 3], sizes = [4, 11], strides = [1, 1]} : vector<4x14xf32> to vector<4x11xf32>
    %140 = tpu.concatenate %136, %137, %138, %139 in 0 : vector<4x11xf32>, vector<4x11xf32>, vector<4x11xf32>, vector<4x11xf32> -> vector<16x11xf32>
    %cst_40 = arith.constant dense<0.000000e+00> : vector<16x11xf32>
    %141 = tpu.matmul %4, %140, %cst_40 {dimension_numbers = #tpu.dot_dimension_numbers<[1], [0], [0], [1], [0, 0, 1, 1], [], []>} : vector<16x16xf32>, vector<16x11xf32>, vector<16x11xf32> -> vector<16x11xf32>
    %142 = vector.broadcast %5 : vector<16x1xf32> to vector<16x11xf32>
    %143 = arith.addf %141, %142 : vector<16x11xf32>
    %cst_41 = arith.constant 0.000000e+00 : f32
    %144 = vector.broadcast %cst_41 : f32 to vector<16x11xf32>
    %145 = arith.cmpf ogt, %143, %144 : vector<16x11xf32>
    %cst_42 = arith.constant 0.00999999977 : f32
    %146 = vector.broadcast %cst_42 : f32 to vector<16x11xf32>
    %147 = arith.mulf %146, %143 : vector<16x11xf32>
    %148 = arith.select %145, %143, %147 : vector<16x11xi1>, vector<16x11xf32>
    %149 = vector.extract_strided_slice %148 {offsets = [0, 0], sizes = [16, 8], strides = [1, 1]} : vector<16x11xf32> to vector<16x8xf32>
    %150 = vector.extract_strided_slice %148 {offsets = [0, 1], sizes = [16, 8], strides = [1, 1]} : vector<16x11xf32> to vector<16x8xf32>
    %151 = vector.extract_strided_slice %148 {offsets = [0, 2], sizes = [16, 8], strides = [1, 1]} : vector<16x11xf32> to vector<16x8xf32>
    %152 = vector.extract_strided_slice %148 {offsets = [0, 3], sizes = [16, 8], strides = [1, 1]} : vector<16x11xf32> to vector<16x8xf32>
    %153 = tpu.concatenate %149, %150, %151, %152 in 0 : vector<16x8xf32>, vector<16x8xf32>, vector<16x8xf32>, vector<16x8xf32> -> vector<64x8xf32>
    %cst_43 = arith.constant dense<0.000000e+00> : vector<8x8xf32>
    %154 = tpu.matmul %6, %153, %cst_43 {dimension_numbers = #tpu.dot_dimension_numbers<[1], [0], [0], [1], [0, 0, 1, 1], [], []>} : vector<8x64xf32>, vector<64x8xf32>, vector<8x8xf32> -> vector<8x8xf32>
    %155 = vector.broadcast %7 : vector<8x1xf32> to vector<8x8xf32>
    %156 = arith.addf %154, %155 : vector<8x8xf32>
    %157 = math.tanh %156 : vector<8x8xf32>
    %158 = vector.extract_strided_slice %157 {offsets = [0, 0], sizes = [4, 8], strides = [1, 1]} : vector<8x8xf32> to vector<4x8xf32>
    %159 = math.exp %158 : vector<4x8xf32>
    %160 = arith.mulf %90, %159 : vector<4x8xf32>
    %161 = vector.extract_strided_slice %157 {offsets = [4, 0], sizes = [4, 8], strides = [1, 1]} : vector<8x8xf32> to vector<4x8xf32>
    %162 = arith.addf %160, %161 : vector<4x8xf32>
    %c1_44 = arith.constant 1 : index
    %c0_45 = arith.constant 0 : index
    %c0_46 = arith.constant 0 : index
    %163 = vector.load %arg10[%c1_44, %c0_45, %c0_46] : memref<2x4x8xf32, #tpu.memory_space<vmem>>, vector<1x4x8xf32>
    %164 = vector.shape_cast %163 : vector<1x4x8xf32> to vector<4x8xf32>
    %165 = vector.shape_cast %162 : vector<4x8xf32> to vector<1x4x8xf32>
    tpu.vector_store %arg10[%c1_44, %c0_45, %c0_46], %165 {strides = array<i32>} : memref<2x4x8xf32, #tpu.memory_space<vmem>>, vector<1x4x8xf32>,
    return
  }
  func.func @transform_0(%arg0: i32) -> (i32, i32, i32) {
    %c0_i32 = arith.constant 0 : i32
    %c0_i32_0 = arith.constant 0 : i32
    %c0_i32_1 = arith.constant 0 : i32
    return %arg0, %c0_i32, %c0_i32_0 : i32, i32, i32
  }
  func.func @transform_1(%arg0: i32) -> (i32, i32) {
    %c0_i32 = arith.constant 0 : i32
    %c0_i32_0 = arith.constant 0 : i32
    %c0_i32_1 = arith.constant 0 : i32
    return %c0_i32, %c0_i32_0 : i32, i32
  }
  func.func @transform_2(%arg0: i32) -> (i32, i32) {
    %c0_i32 = arith.constant 0 : i32
    %c0_i32_0 = arith.constant 0 : i32
    %c0_i32_1 = arith.constant 0 : i32
    return %c0_i32, %c0_i32_0 : i32, i32
  }
  func.func @transform_3(%arg0: i32) -> (i32, i32) {
    %c0_i32 = arith.constant 0 : i32
    %c0_i32_0 = arith.constant 0 : i32
    %c0_i32_1 = arith.constant 0 : i32
    return %c0_i32, %c0_i32_0 : i32, i32
  }
  func.func @transform_4(%arg0: i32) -> (i32, i32) {
    %c0_i32 = arith.constant 0 : i32
    %c0_i32_0 = arith.constant 0 : i32
    %c0_i32_1 = arith.constant 0 : i32
    return %c0_i32, %c0_i32_0 : i32, i32
  }
  func.func @transform_5(%arg0: i32) -> (i32, i32) {
    %c0_i32 = arith.constant 0 : i32
    %c0_i32_0 = arith.constant 0 : i32
    %c0_i32_1 = arith.constant 0 : i32
    return %c0_i32, %c0_i32_0 : i32, i32
  }
  func.func @transform_6(%arg0: i32) -> (i32, i32) {
    %c0_i32 = arith.constant 0 : i32
    %c0_i32_0 = arith.constant 0 : i32
    %c0_i32_1 = arith.constant 0 : i32
    return %c0_i32, %c0_i32_0 : i32, i32
  }
  func.func @transform_7(%arg0: i32) -> (i32, i32) {
    %c0_i32 = arith.constant 0 : i32
    %c0_i32_0 = arith.constant 0 : i32
    %c0_i32_1 = arith.constant 0 : i32
    return %c0_i32, %c0_i32_0 : i32, i32
  }
  func.func @transform_8(%arg0: i32) -> (i32, i32) {
    %c0_i32 = arith.constant 0 : i32
    %c0_i32_0 = arith.constant 0 : i32
    %c0_i32_1 = arith.constant 0 : i32
    return %c0_i32, %c0_i32_0 : i32, i32
  }
  func.func @transform_9(%arg0: i32) -> (i32, i32, i32) {
    %c0_i32 = arith.constant 0 : i32
    %c0_i32_0 = arith.constant 0 : i32
    %c0_i32_1 = arith.constant 0 : i32
    return %arg0, %c0_i32, %c0_i32_0 : i32, i32, i32
  }
  func.func @transform_10(%arg0: i32) -> (i32, i32, i32) {
    %c0_i32 = arith.constant 0 : i32
    %c0_i32_0 = arith.constant 0 : i32
    %c0_i32_1 = arith.constant 0 : i32
    return %arg0, %c0_i32, %c0_i32_0 : i32, i32, i32
  }
}

</mosaic_0001>

<llo_original>
// kernel: lifting_scheme_forward.1
$region0: #{lifting_scheme_forward.1}
  #allocation0 [shape = 'u32[]', space=smem, size = 0x4, offset = 0x4, fixed_abs, tag = 'smem constant byte address 0x4 - core index']
  #allocation1 [shape = 'u32[144,128]{1,0:T(1,128)}', space=vmem, size = 0x12000, scoped, tag = 'internal scratch']
  %s0 = inlined_call_operand.vmem [shape: f32[2,8,8], index: 0, kind: input, shape index: {}]
  %s1 = inlined_call_operand.vmem [shape: f32[16,32], index: 1, kind: input, shape index: {}]
  %s2 = inlined_call_operand.vmem [shape: f32[16,1], index: 2, kind: input, shape index: {}]
  %s3 = inlined_call_operand.vmem [shape: f32[8,64], index: 3, kind: input, shape index: {}]
  %s4 = inlined_call_operand.vmem [shape: f32[8,1], index: 4, kind: input, shape index: {}]
  %s5 = inlined_call_operand.vmem [shape: f32[16,16], index: 5, kind: input, shape index: {}]
  %s6 = inlined_call_operand.vmem [shape: f32[16,1], index: 6, kind: input, shape index: {}]
  %s7 = inlined_call_operand.vmem [shape: f32[8,64], index: 7, kind: input, shape index: {}]
  %s8 = inlined_call_operand.vmem [shape: f32[8,1], index: 8, kind: input, shape index: {}]
  %s9 = inlined_call_operand.hbm [shape: f32[2,4,8], index: 9, kind: output, shape index: {0}]
  %s10 = inlined_call_operand.hbm [shape: f32[2,4,8], index: 10, kind: output, shape index: {1}]
  %11 = xla_tuple %s9, %s10
  %s12 = sld [smem:[#allocation0]]
  $region54: #{lifting_scheme_forward.1} parent=0
    _
  %s14 = ssub.s32 1, %s12
  %s15 = scalar_select 0, %s14, %s12
  $region1: #{lifting_scheme_forward.1} parent=0
    #allocation2 [shape = 'u8[4096]{0}', space=vmem, size = 0x1000, scoped, tag = 'output window, operand 0, single buffered']
    #allocation3 [shape = 's32[1]{0}', space=sflag, size = 0x4, scoped, tag = 'scoped memory for lifting_scheme_forward.1']
    #allocation4 [shape = 'u8[4096]{0}', space=vmem, size = 0x1000, scoped, tag = 'output window, operand 1, single buffered']
    #allocation5 [shape = 's32[1]{0}', space=sflag, size = 0x4, scoped, tag = 'scoped memory for lifting_scheme_forward.1']
    %16 = vsyncpa [#allocation3], 0
    %17 = vsyncpa [#allocation5], 0
    // Predicated region
    $region2: #{lifting_scheme_forward.1} parent=1 // pred_check
      _
    $region3: #{lifting_scheme_forward.1} parent=1 // pred_check_branch
      %19 = sbr.rel (0) target = $region5
    $region4: #{lifting_scheme_forward.1} parent=1 // pred_region
      _
    $region5: #{lifting_scheme_forward.1} parent=1 // pred_fallthru
      _
    // Predicated region
    $region6: #{lifting_scheme_forward.1} parent=1 // pred_check
      _
    $region7: #{lifting_scheme_forward.1} parent=1 // pred_check_branch
      %21 = sbr.rel (0) target = $region9
    $region8: #{lifting_scheme_forward.1} parent=1 // pred_region
      _
    $region9: #{lifting_scheme_forward.1} parent=1 // pred_fallthru
      _
    // Predicated region
    $region10: #{lifting_scheme_forward.1} parent=1 // pred_check
      _
    $region11: #{lifting_scheme_forward.1} parent=1 // pred_check_branch
      %23 = sbr.rel (0) target = $region13
    $region12: #{lifting_scheme_forward.1} parent=1 // pred_region
      _
    $region13: #{lifting_scheme_forward.1} parent=1 // pred_fallthru
      _
    // Predicated region
    $region14: #{lifting_scheme_forward.1} parent=1 // pred_check
      _
    $region15: #{lifting_scheme_forward.1} parent=1 // pred_check_branch
      %25 = sbr.rel (0) target = $region17
    $region16: #{lifting_scheme_forward.1} parent=1 // pred_region
      _
    $region17: #{lifting_scheme_forward.1} parent=1 // pred_fallthru
      _
    // Predicated region
    $region18: #{lifting_scheme_forward.1} parent=1 // pred_check
      _
    $region19: #{lifting_scheme_forward.1} parent=1 // pred_check_branch
      %27 = sbr.rel (0) target = $region21
    $region20: #{lifting_scheme_forward.1} parent=1 // pred_region
      _
    $region21: #{lifting_scheme_forward.1} parent=1 // pred_fallthru
      _
    // Predicated region
    $region22: #{lifting_scheme_forward.1} parent=1 // pred_check
      _
    $region23: #{lifting_scheme_forward.1} parent=1 // pred_check_branch
      %29 = sbr.rel (0) target = $region25
    $region24: #{lifting_scheme_forward.1} parent=1 // pred_region
      _
    $region25: #{lifting_scheme_forward.1} parent=1 // pred_fallthru
      _
    // Predicated region
    $region26: #{lifting_scheme_forward.1} parent=1 // pred_check
      _
    $region27: #{lifting_scheme_forward.1} parent=1 // pred_check_branch
      %31 = sbr.rel (0) target = $region29
    $region28: #{lifting_scheme_forward.1} parent=1 // pred_region
      _
    $region29: #{lifting_scheme_forward.1} parent=1 // pred_fallthru
      _
    // Predicated region
    $region30: #{lifting_scheme_forward.1} parent=1 // pred_check
      _
    $region31: #{lifting_scheme_forward.1} parent=1 // pred_check_branch
      %33 = sbr.rel (0) target = $region33
    $region32: #{lifting_scheme_forward.1} parent=1 // pred_region
      _
    $region33: #{lifting_scheme_forward.1} parent=1 // pred_fallthru
      _
    // Predicated region
    $region34: #{lifting_scheme_forward.1} parent=1 // pred_check
      _
    $region35: #{lifting_scheme_forward.1} parent=1 // pred_check_branch
      %35 = sbr.rel (0) target = $region37
    $region36: #{lifting_scheme_forward.1} parent=1 // pred_region
      _
    $region37: #{lifting_scheme_forward.1} parent=1 // pred_fallthru
      _
    %v36 = vld [vmem:[%s1] sm:$0xff]
    %v37 = vld [vmem:[%s1 + $0x8] sm:$0xff]
    %v38 = vld [vmem:[%s2] sm:$0xff]
    %v39 = vld [vmem:[%s2 + $0x8] sm:$0xff]
    %v40 = vld [vmem:[%s3] sm:$0xff]
    %v41 = vld [vmem:[%s4] sm:$0xff]
    %v42 = vld [vmem:[%s5] sm:$0xff]
    %v43 = vld [vmem:[%s5 + $0x8] sm:$0xff]
    %v44 = vld [vmem:[%s6] sm:$0xff]
    %v45 = vld [vmem:[%s6 + $0x8] sm:$0xff]
    %v46 = vld [vmem:[%s7] sm:$0xff]
    %v47 = vld [vmem:[%s8] sm:$0xff]
    %v48 = vld [vmem:[%s0] sm:$0xff]
    %49 = vxpose.xlu0.b32.start [1/16] %v48, 128
    %50 = vxpose.xlu0.b32.cont [2/16] 0.0, 128
    %51 = vxpose.xlu0.b32.cont [3/16] 0.0, 128
    %52 = vxpose.xlu0.b32.cont [4/16] 0.0, 128
    %53 = vxpose.xlu0.b32.cont [5/16] 0.0, 128
    %54 = vxpose.xlu0.b32.cont [6/16] 0.0, 128
    %55 = vxpose.xlu0.b32.cont [7/16] 0.0, 128
    %56 = vxpose.xlu0.b32.cont [8/16] 0.0, 128
    %57 = vxpose.xlu0.b32.cont [9/16] 0.0, 128
    %58 = vxpose.xlu0.b32.cont [10/16] 0.0, 128
    %59 = vxpose.xlu0.b32.cont [11/16] 0.0, 128
    %60 = vxpose.xlu0.b32.cont [12/16] 0.0, 128
    %61 = vxpose.xlu0.b32.cont [13/16] 0.0, 128
    %62 = vxpose.xlu0.b32.cont [14/16] 0.0, 128
    %63 = vxpose.xlu0.b32.cont [15/16] 0.0, 128
    %64 = vxpose.xlu0.b32.end [16/16] 0.0, 128
    %v65 = vpop.trf.xlu0
    %v66 = vpop.trf.xlu0
    %v67 = vpop.trf.xlu0
    %v68 = vpop.trf.xlu0
    %v69 = vpop.trf.xlu0
    %v70 = vpop.trf.xlu0
    %v71 = vpop.trf.xlu0
    %v72 = vpop.trf.xlu0
    %v73 = vpop.trf.xlu0
    %v74 = vpop.trf.xlu0
    %v75 = vpop.trf.xlu0
    %v76 = vpop.trf.xlu0
    %v77 = vpop.trf.xlu0
    %v78 = vpop.trf.xlu0
    %v79 = vpop.trf.xlu0
    %v80 = vpop.trf.xlu0
    %82 = vrot.lane.b32.xlu0 %v65, 1
    %v83 = vpop.permute.xlu0 %82
    %85 = vrot.lane.b32.xlu0 %v65, 2
    %v86 = vpop.permute.xlu0 %85
    %88 = vrot.lane.b32.xlu0 %v65, 3
    %v89 = vpop.permute.xlu0 %88
    %91 = vrot.lane.b32.xlu0 %v65, 4
    %v92 = vpop.permute.xlu0 %91
    %94 = vrot.lane.b32.xlu0 %v65, 5
    %v95 = vpop.permute.xlu0 %94
    %97 = vrot.lane.b32.xlu0 %v65, 6
    %v98 = vpop.permute.xlu0 %97
    %vm100 = vcmask 7168
    %v101 = vsel %vm100, %v65, %v83
    %vm102 = vcmask 15360
    %v103 = vsel %vm102, %v101, %v86
    %vm104 = vcmask 23552
    %v105 = vsel %vm104, %v103, %v89
    %vm106 = vcmask 89088
    %v107 = vsel %vm106, %v105, %v92
    %vm108 = vcmask 97280
    %v109 = vsel %vm108, %v107, %v95
    %vm110 = vcmask 105472
    %v111 = vsel %vm110, %v109, %v98
    %112 = vrot.lane.b32.xlu0 %v65, 125
    %v113 = vpop.permute.xlu0 %112
    %115 = vrot.lane.b32.xlu0 %v65, 127
    %v116 = vpop.permute.xlu0 %115
    %118 = vrot.lane.b32.xlu0 %v65, 7
    %v119 = vpop.permute.xlu0 %118
    %121 = vrot.lane.b32.xlu0 %v65, 9
    %v122 = vpop.permute.xlu0 %121
    %v124 = vsel %vm100, %v113, %v116
    %v125 = vsel %vm102, %v124, %v83
    %v126 = vsel %vm104, %v125, %v89
    %v127 = vsel %vm106, %v126, %v95
    %v128 = vsel %vm108, %v127, %v119
    %v129 = vsel %vm110, %v128, %v122
    %v131 = vrot.slane %v129, 4
    %vm133 = vcmask 1043456
    %v134 = vsel %vm133, %v111, %v131
    %136 = vrot.lane.b32.xlu0 %v134, 127
    %v137 = vpop.permute.xlu0 %136
    %139 = vrot.lane.b32.xlu0 %v134, 126
    %v140 = vpop.permute.xlu0 %139
    %142 = vrot.lane.b32.xlu0 %v134, 125
    %v143 = vpop.permute.xlu0 %142
    %146 = vset.pattern.permute.xlu0 0
    %147 = vperm.xlu0 %146, %v38
    %v148 = vpop.permute.xlu0 %147
    %151 = vset.pattern.permute.xlu0 0
    %152 = vperm.xlu0 %151, %v39
    %v153 = vpop.permute.xlu0 %152
    %vm155 = vcmask 261120
    %v157 = vsel %vm155, %v36, 0
    %v160 = vsel %vm155, %v37, 0
    %162 = vmatprep.subr.mxu0 0.0
    %163 = vmatpush1.msra.mxu0 %v134
    %164 = vmatprep.subr.mxu0 0.0
    %165 = vmatpush1.msra.mxu0 %v137
    %166 = vmatprep.subr.mxu0 0.0
    %167 = vmatpush1.msra.mxu0 %v140
    %168 = vmatprep.subr.mxu0 0.0
    %169 = vmatpush1.msra.mxu0 %v143
    %170 = vmatprep.subr.mxu0 0.0
    %171 = vmatpush1.msra.mxu0 0.0
    %172 = vmatprep.subr.mxu0 0.0
    %173 = vmatpush1.msra.mxu0 0.0
    %174 = vmatprep.subr.mxu0 0.0
    %175 = vmatpush1.msra.mxu0 0.0
    %176 = vmatprep.subr.mxu0 0.0
    %177 = vmatpush1.msra.mxu0 0.0
    %178 = vmatprep.subr.mxu0 0.0
    %179 = vmatpush1.msra.mxu0 0.0
    %180 = vmatprep.subr.mxu0 0.0
    %181 = vmatpush1.msra.mxu0 0.0
    %182 = vmatprep.subr.mxu0 0.0
    %183 = vmatpush1.msra.mxu0 0.0
    %184 = vmatprep.subr.mxu0 0.0
    %185 = vmatpush1.msra.mxu0 0.0
    %186 = vmatprep.subr.mxu0 0.0
    %187 = vmatpush1.msra.mxu0 0.0
    %188 = vmatprep.subr.mxu0 0.0
    %189 = vmatpush1.msra.mxu0 0.0
    %190 = vmatprep.subr.mxu0 0.0
    %191 = vmatpush1.msra.mxu0 0.0
    %192 = vmatprep.subr.mxu0 0.0
    %193 = vmatpush1.msra.mxu0 0.0
    %194 = vmatprep.subr.mxu0 0.0
    %195 = vmatpush1.msra.mxu0 0.0
    %196 = vmatprep.subr.mxu0 0.0
    %197 = vmatpush1.msra.mxu0 0.0
    %198 = vmatprep.subr.mxu0 0.0
    %199 = vmatpush1.msra.mxu0 0.0
    %200 = vmatprep.subr.mxu0 0.0
    %201 = vmatpush1.msra.mxu0 0.0
    %202 = vmatprep.subr.mxu0 0.0
    %203 = vmatpush1.msra.mxu0 0.0
    %204 = vmatprep.subr.mxu0 0.0
    %205 = vmatpush1.msra.mxu0 0.0
    %206 = vmatprep.subr.mxu0 0.0
    %207 = vmatpush1.msra.mxu0 0.0
    %208 = vmatprep.subr.mxu0 0.0
    %209 = vmatpush1.msra.mxu0 0.0
    %210 = vmatprep.subr.mxu0 0.0
    %211 = vmatpush1.msra.mxu0 0.0
    %212 = vmatprep.subr.mxu0 0.0
    %213 = vmatpush1.msra.mxu0 0.0
    %214 = vmatprep.subr.mxu0 0.0
    %215 = vmatpush1.msra.mxu0 0.0
    %216 = vmatprep.subr.mxu0 0.0
    %217 = vmatpush1.msra.mxu0 0.0
    %218 = vmatprep.subr.mxu0 0.0
    %219 = vmatpush1.msra.mxu0 0.0
    %220 = vmatprep.subr.mxu0 0.0
    %221 = vmatpush1.msra.mxu0 0.0
    %222 = vmatprep.subr.mxu0 0.0
    %223 = vmatpush1.msra.mxu0 0.0
    %224 = vmatprep.subr.mxu0 0.0
    %225 = vmatpush1.msra.mxu0 0.0
    %226 = vmatprep.mubr.f32.mxu0 0.0
    %227 = vmatmul.mubr.f32.gmra.mrb[0].mxu0 %v157
    %v228 = vpop.f32.mrb[0].mxu0
    %v229 = vadd.f32 %v148, %v228
    %v230 = vpop.f32.mrb[0].mxu0
    %231 = vmatprep.mubr.f32.mxu0 0.0
    %232 = vmatmul.mubr.f32.gmra.mrb[0].mxu0 %v160
    %v233 = vpop.f32.mrb[0].mxu0
    %v234 = vadd.f32 %v153, %v233
    %v235 = vpop.f32.mrb[0].mxu0
    %236 = vdwg.mxu0
    %vm237 = vcmp.gt.f32.partialorder %v229, 0.0
    %vm238 = vcmp.gt.f32.partialorder %v234, 0.0
    %v239 = vmul.f32 %v229, 0.01
    %v240 = vmul.f32 %v234, 0.01
    %v241 = vsel %vm237, %v229, %v239
    %v242 = vsel %vm238, %v234, %v240
    %245 = vrot.lane.b32.xlu0 %v241, 127
    %v246 = vpop.permute.xlu0 %245
    %247 = vrot.lane.b32.xlu0 %v242, 127
    %v248 = vpop.permute.xlu0 %247
    %251 = vrot.lane.b32.xlu0 %v241, 126
    %v252 = vpop.permute.xlu0 %251
    %253 = vrot.lane.b32.xlu0 %v242, 126
    %v254 = vpop.permute.xlu0 %253
    %257 = vrot.lane.b32.xlu0 %v241, 125
    %v258 = vpop.permute.xlu0 %257
    %259 = vrot.lane.b32.xlu0 %v242, 125
    %v260 = vpop.permute.xlu0 %259
    %264 = vset.pattern.permute.xlu0 0
    %265 = vperm.xlu0 %264, %v41
    %v266 = vpop.permute.xlu0 %265
    %vm268 = vcmask 523264
    %v270 = vsel %vm268, %v40, 0
    %272 = vmatprep.subr.mxu0 0.0
    %273 = vmatpush1.msra.mxu0 %v241
    %274 = vmatprep.subr.mxu0 0.0
    %275 = vmatpush1.msra.mxu0 %v242
    %276 = vmatprep.subr.mxu0 0.0
    %277 = vmatpush1.msra.mxu0 %v246
    %278 = vmatprep.subr.mxu0 0.0
    %279 = vmatpush1.msra.mxu0 %v248
    %280 = vmatprep.subr.mxu0 0.0
    %281 = vmatpush1.msra.mxu0 %v252
    %282 = vmatprep.subr.mxu0 0.0
    %283 = vmatpush1.msra.mxu0 %v254
    %284 = vmatprep.subr.mxu0 0.0
    %285 = vmatpush1.msra.mxu0 %v258
    %286 = vmatprep.subr.mxu0 0.0
    %287 = vmatpush1.msra.mxu0 %v260
    %288 = vmatprep.subr.mxu0 0.0
    %289 = vmatpush1.msra.mxu0 0.0
    %290 = vmatprep.subr.mxu0 0.0
    %291 = vmatpush1.msra.mxu0 0.0
    %292 = vmatprep.subr.mxu0 0.0
    %293 = vmatpush1.msra.mxu0 0.0
    %294 = vmatprep.subr.mxu0 0.0
    %295 = vmatpush1.msra.mxu0 0.0
    %296 = vmatprep.subr.mxu0 0.0
    %297 = vmatpush1.msra.mxu0 0.0
    %298 = vmatprep.subr.mxu0 0.0
    %299 = vmatpush1.msra.mxu0 0.0
    %300 = vmatprep.subr.mxu0 0.0
    %301 = vmatpush1.msra.mxu0 0.0
    %302 = vmatprep.subr.mxu0 0.0
    %303 = vmatpush1.msra.mxu0 0.0
    %304 = vmatprep.subr.mxu0 0.0
    %305 = vmatpush1.msra.mxu0 0.0
    %306 = vmatprep.subr.mxu0 0.0
    %307 = vmatpush1.msra.mxu0 0.0
    %308 = vmatprep.subr.mxu0 0.0
    %309 = vmatpush1.msra.mxu0 0.0
    %310 = vmatprep.subr.mxu0 0.0
    %311 = vmatpush1.msra.mxu0 0.0
    %312 = vmatprep.subr.mxu0 0.0
    %313 = vmatpush1.msra.mxu0 0.0
    %314 = vmatprep.subr.mxu0 0.0
    %315 = vmatpush1.msra.mxu0 0.0
    %316 = vmatprep.subr.mxu0 0.0
    %317 = vmatpush1.msra.mxu0 0.0
    %318 = vmatprep.subr.mxu0 0.0
    %319 = vmatpush1.msra.mxu0 0.0
    %320 = vmatprep.subr.mxu0 0.0
    %321 = vmatpush1.msra.mxu0 0.0
    %322 = vmatprep.subr.mxu0 0.0
    %323 = vmatpush1.msra.mxu0 0.0
    %324 = vmatprep.subr.mxu0 0.0
    %325 = vmatpush1.msra.mxu0 0.0
    %326 = vmatprep.subr.mxu0 0.0
    %327 = vmatpush1.msra.mxu0 0.0
    %328 = vmatprep.subr.mxu0 0.0
    %329 = vmatpush1.msra.mxu0 0.0
    %330 = vmatprep.subr.mxu0 0.0
    %331 = vmatpush1.msra.mxu0 0.0
    %332 = vmatprep.subr.mxu0 0.0
    %333 = vmatpush1.msra.mxu0 0.0
    %334 = vmatprep.subr.mxu0 0.0
    %335 = vmatpush1.msra.mxu0 0.0
    %336 = vmatprep.mubr.f32.mxu0 0.0
    %337 = vmatmul.mubr.f32.gmra.mrb[0].mxu0 %v270
    %v338 = vpop.f32.mrb[0].mxu0
    %v339 = vadd.f32 %v266, %v338
    %v340 = vpop.f32.mrb[0].mxu0
    %341 = vdwg.mxu0
    %v342 = vtanh.pop %v339
    %v343 = vmul.f32 %v342, 1.442695
    %v344 = vpow.pop %v343
    %v346 = vrot.slane %v344, 4
    %v348 = vmul.f32 %v65, %v346
    %v349 = vsub.f32 %v348, %v342
    %vm350 = vcmask 64516
    %351 = vst.msk [vmem:[#allocation4 - $0x4] sm:$0xf0] %vm350, %v349
    %353 = vrot.lane.b32.xlu0 %v349, 1
    %v354 = vpop.permute.xlu0 %353
    %356 = vrot.lane.b32.xlu0 %v349, 2
    %v357 = vpop.permute.xlu0 %356
    %359 = vrot.lane.b32.xlu0 %v349, 3
    %v360 = vpop.permute.xlu0 %359
    %362 = vrot.lane.b32.xlu0 %v349, 4
    %v363 = vpop.permute.xlu0 %362
    %365 = vrot.lane.b32.xlu0 %v349, 5
    %v366 = vpop.permute.xlu0 %365
    %368 = vrot.lane.b32.xlu0 %v349, 6
    %v369 = vpop.permute.xlu0 %368
    %v371 = vsel %vm100, %v349, %v354
    %v372 = vsel %vm102, %v371, %v357
    %v373 = vsel %vm104, %v372, %v360
    %v374 = vsel %vm106, %v373, %v363
    %v375 = vsel %vm108, %v374, %v366
    %v376 = vsel %vm110, %v375, %v369
    %v378 = vrot.slane %v376, 4
    %380 = vrot.lane.b32.xlu0 %v376, 127
    %v381 = vpop.permute.xlu0 %380
    %383 = vrot.lane.b32.xlu0 %v378, 126
    %v384 = vpop.permute.xlu0 %383
    %386 = vrot.lane.b32.xlu0 %v376, 125
    %v387 = vpop.permute.xlu0 %386
    %v389 = vsel %vm133, %v378, %v381
    %v390 = vsel %vm133, %v384, %v387
    %392 = vset.pattern.permute.xlu0 0
    %393 = vperm.xlu0 %392, %v44
    %v394 = vpop.permute.xlu0 %393
    %397 = vset.pattern.permute.xlu0 0
    %398 = vperm.xlu0 %397, %v45
    %v399 = vpop.permute.xlu0 %398
    %vm401 = vcmask 130048
    %v403 = vsel %vm401, %v42, 0
    %v406 = vsel %vm401, %v43, 0
    %408 = vmatprep.subr.mxu0 0.0
    %409 = vmatpush1.msra.mxu0 %v389
    %410 = vmatprep.subr.mxu0 0.0
    %411 = vmatpush1.msra.mxu0 %v390
    %412 = vmatprep.subr.mxu0 0.0
    %413 = vmatpush1.msra.mxu0 0.0
    %414 = vmatprep.subr.mxu0 0.0
    %415 = vmatpush1.msra.mxu0 0.0
    %416 = vmatprep.subr.mxu0 0.0
    %417 = vmatpush1.msra.mxu0 0.0
    %418 = vmatprep.subr.mxu0 0.0
    %419 = vmatpush1.msra.mxu0 0.0
    %420 = vmatprep.subr.mxu0 0.0
    %421 = vmatpush1.msra.mxu0 0.0
    %422 = vmatprep.subr.mxu0 0.0
    %423 = vmatpush1.msra.mxu0 0.0
    %424 = vmatprep.subr.mxu0 0.0
    %425 = vmatpush1.msra.mxu0 0.0
    %426 = vmatprep.subr.mxu0 0.0
    %427 = vmatpush1.msra.mxu0 0.0
    %428 = vmatprep.subr.mxu0 0.0
    %429 = vmatpush1.msra.mxu0 0.0
    %430 = vmatprep.subr.mxu0 0.0
    %431 = vmatpush1.msra.mxu0 0.0
    %432 = vmatprep.subr.mxu0 0.0
    %433 = vmatpush1.msra.mxu0 0.0
    %434 = vmatprep.subr.mxu0 0.0
    %435 = vmatpush1.msra.mxu0 0.0
    %436 = vmatprep.subr.mxu0 0.0
    %437 = vmatpush1.msra.mxu0 0.0
    %438 = vmatprep.subr.mxu0 0.0
    %439 = vmatpush1.msra.mxu0 0.0
    %440 = vmatprep.subr.mxu0 0.0
    %441 = vmatpush1.msra.mxu0 0.0
    %442 = vmatprep.subr.mxu0 0.0
    %443 = vmatpush1.msra.mxu0 0.0
    %444 = vmatprep.subr.mxu0 0.0
    %445 = vmatpush1.msra.mxu0 0.0
    %446 = vmatprep.subr.mxu0 0.0
    %447 = vmatpush1.msra.mxu0 0.0
    %448 = vmatprep.subr.mxu0 0.0
    %449 = vmatpush1.msra.mxu0 0.0
    %450 = vmatprep.subr.mxu0 0.0
    %451 = vmatpush1.msra.mxu0 0.0
    %452 = vmatprep.subr.mxu0 0.0
    %453 = vmatpush1.msra.mxu0 0.0
    %454 = vmatprep.subr.mxu0 0.0
    %455 = vmatpush1.msra.mxu0 0.0
    %456 = vmatprep.subr.mxu0 0.0
    %457 = vmatpush1.msra.mxu0 0.0
    %458 = vmatprep.subr.mxu0 0.0
    %459 = vmatpush1.msra.mxu0 0.0
    %460 = vmatprep.subr.mxu0 0.0
    %461 = vmatpush1.msra.mxu0 0.0
    %462 = vmatprep.subr.mxu0 0.0
    %463 = vmatpush1.msra.mxu0 0.0
    %464 = vmatprep.subr.mxu0 0.0
    %465 = vmatpush1.msra.mxu0 0.0
    %466 = vmatprep.subr.mxu0 0.0
    %467 = vmatpush1.msra.mxu0 0.0
    %468 = vmatprep.subr.mxu0 0.0
    %469 = vmatpush1.msra.mxu0 0.0
    %470 = vmatprep.subr.mxu0 0.0
    %471 = vmatpush1.msra.mxu0 0.0
    %472 = vmatprep.mubr.f32.mxu0 0.0
    %473 = vmatmul.mubr.f32.gmra.mrb[0].mxu0 %v403
    %v474 = vpop.f32.mrb[0].mxu0
    %v475 = vadd.f32 %v394, %v474
    %v476 = vpop.f32.mrb[0].mxu0
    %477 = vmatprep.mubr.f32.mxu0 0.0
    %478 = vmatmul.mubr.f32.gmra.mrb[0].mxu0 %v406
    %v479 = vpop.f32.mrb[0].mxu0
    %v480 = vadd.f32 %v399, %v479
    %v481 = vpop.f32.mrb[0].mxu0
    %482 = vdwg.mxu0
    %vm483 = vcmp.gt.f32.partialorder %v475, 0.0
    %vm484 = vcmp.gt.f32.partialorder %v480, 0.0
    %v485 = vmul.f32 %v475, 0.01
    %v486 = vmul.f32 %v480, 0.01
    %v487 = vsel %vm483, %v475, %v485
    %v488 = vsel %vm484, %v480, %v486
    %491 = vrot.lane.b32.xlu0 %v487, 127
    %v492 = vpop.permute.xlu0 %491
    %493 = vrot.lane.b32.xlu0 %v488, 127
    %v494 = vpop.permute.xlu0 %493
    %497 = vrot.lane.b32.xlu0 %v487, 126
    %v498 = vpop.permute.xlu0 %497
    %499 = vrot.lane.b32.xlu0 %v488, 126
    %v500 = vpop.permute.xlu0 %499
    %503 = vrot.lane.b32.xlu0 %v487, 125
    %v504 = vpop.permute.xlu0 %503
    %505 = vrot.lane.b32.xlu0 %v488, 125
    %v506 = vpop.permute.xlu0 %505
    %510 = vset.pattern.permute.xlu0 0
    %511 = vperm.xlu0 %510, %v47
    %v512 = vpop.permute.xlu0 %511
    %v515 = vsel %vm268, %v46, 0
    %517 = vmatprep.subr.mxu0 0.0
    %518 = vmatpush1.msra.mxu0 %v487
    %519 = vmatprep.subr.mxu0 0.0
    %520 = vmatpush1.msra.mxu0 %v488
    %521 = vmatprep.subr.mxu0 0.0
    %522 = vmatpush1.msra.mxu0 %v492
    %523 = vmatprep.subr.mxu0 0.0
    %524 = vmatpush1.msra.mxu0 %v494
    %525 = vmatprep.subr.mxu0 0.0
    %526 = vmatpush1.msra.mxu0 %v498
    %527 = vmatprep.subr.mxu0 0.0
    %528 = vmatpush1.msra.mxu0 %v500
    %529 = vmatprep.subr.mxu0 0.0
    %530 = vmatpush1.msra.mxu0 %v504
    %531 = vmatprep.subr.mxu0 0.0
    %532 = vmatpush1.msra.mxu0 %v506
    %533 = vmatprep.subr.mxu0 0.0
    %534 = vmatpush1.msra.mxu0 0.0
    %535 = vmatprep.subr.mxu0 0.0
    %536 = vmatpush1.msra.mxu0 0.0
    %537 = vmatprep.subr.mxu0 0.0
    %538 = vmatpush1.msra.mxu0 0.0
    %539 = vmatprep.subr.mxu0 0.0
    %540 = vmatpush1.msra.mxu0 0.0
    %541 = vmatprep.subr.mxu0 0.0
    %542 = vmatpush1.msra.mxu0 0.0
    %543 = vmatprep.subr.mxu0 0.0
    %544 = vmatpush1.msra.mxu0 0.0
    %545 = vmatprep.subr.mxu0 0.0
    %546 = vmatpush1.msra.mxu0 0.0
    %547 = vmatprep.subr.mxu0 0.0
    %548 = vmatpush1.msra.mxu0 0.0
    %549 = vmatprep.subr.mxu0 0.0
    %550 = vmatpush1.msra.mxu0 0.0
    %551 = vmatprep.subr.mxu0 0.0
    %552 = vmatpush1.msra.mxu0 0.0
    %553 = vmatprep.subr.mxu0 0.0
    %554 = vmatpush1.msra.mxu0 0.0
    %555 = vmatprep.subr.mxu0 0.0
    %556 = vmatpush1.msra.mxu0 0.0
    %557 = vmatprep.subr.mxu0 0.0
    %558 = vmatpush1.msra.mxu0 0.0
    %559 = vmatprep.subr.mxu0 0.0
    %560 = vmatpush1.msra.mxu0 0.0
    %561 = vmatprep.subr.mxu0 0.0
    %562 = vmatpush1.msra.mxu0 0.0
    %563 = vmatprep.subr.mxu0 0.0
    %564 = vmatpush1.msra.mxu0 0.0
    %565 = vmatprep.subr.mxu0 0.0
    %566 = vmatpush1.msra.mxu0 0.0
    %567 = vmatprep.subr.mxu0 0.0
    %568 = vmatpush1.msra.mxu0 0.0
    %569 = vmatprep.subr.mxu0 0.0
    %570 = vmatpush1.msra.mxu0 0.0
    %571 = vmatprep.subr.mxu0 0.0
    %572 = vmatpush1.msra.mxu0 0.0
    %573 = vmatprep.subr.mxu0 0.0
    %574 = vmatpush1.msra.mxu0 0.0
    %575 = vmatprep.subr.mxu0 0.0
    %576 = vmatpush1.msra.mxu0 0.0
    %577 = vmatprep.subr.mxu0 0.0
    %578 = vmatpush1.msra.mxu0 0.0
    %579 = vmatprep.subr.mxu0 0.0
    %580 = vmatpush1.msra.mxu0 0.0
    %581 = vmatprep.mubr.f32.mxu0 0.0
    %582 = vmatmul.mubr.f32.gmra.mrb[0].mxu0 %v515
    %v583 = vpop.f32.mrb[0].mxu0
    %v584 = vadd.f32 %v512, %v583
    %v585 = vpop.f32.mrb[0].mxu0
    %586 = vdwg.mxu0
    %v587 = vtanh.pop %v584
    %v588 = vmul.f32 %v587, 1.442695
    %v589 = vpow.pop %v588
    %v590 = vmul.f32 %v65, %v589
    %v592 = vrot.slane %v587, 4
    %v594 = vadd.f32 %v590, %v592
    %vm595 = vcmask 60416
    %596 = vst.msk [vmem:[#allocation2] sm:$0xf] %vm595, %v594
    %s597 = scalar_lea.vmem %s0, 8
    %v598 = vld [vmem:[%s597] sm:$0xff]
    %599 = vxpose.xlu0.b32.start [1/16] %v598, 128
    %600 = vxpose.xlu0.b32.cont [2/16] 0.0, 128
    %601 = vxpose.xlu0.b32.cont [3/16] 0.0, 128
    %602 = vxpose.xlu0.b32.cont [4/16] 0.0, 128
    %603 = vxpose.xlu0.b32.cont [5/16] 0.0, 128
    %604 = vxpose.xlu0.b32.cont [6/16] 0.0, 128
    %605 = vxpose.xlu0.b32.cont [7/16] 0.0, 128
    %606 = vxpose.xlu0.b32.cont [8/16] 0.0, 128
    %607 = vxpose.xlu0.b32.cont [9/16] 0.0, 128
    %608 = vxpose.xlu0.b32.cont [10/16] 0.0, 128
    %609 = vxpose.xlu0.b32.cont [11/16] 0.0, 128
    %610 = vxpose.xlu0.b32.cont [12/16] 0.0, 128
    %611 = vxpose.xlu0.b32.cont [13/16] 0.0, 128
    %612 = vxpose.xlu0.b32.cont [14/16] 0.0, 128
    %613 = vxpose.xlu0.b32.cont [15/16] 0.0, 128
    %614 = vxpose.xlu0.b32.end [16/16] 0.0, 128
    %v615 = vpop.trf.xlu0
    %v616 = vpop.trf.xlu0
    %v617 = vpop.trf.xlu0
    %v618 = vpop.trf.xlu0
    %v619 = vpop.trf.xlu0
    %v620 = vpop.trf.xlu0
    %v621 = vpop.trf.xlu0
    %v622 = vpop.trf.xlu0
    %v623 = vpop.trf.xlu0
    %v624 = vpop.trf.xlu0
    %v625 = vpop.trf.xlu0
    %v626 = vpop.trf.xlu0
    %v627 = vpop.trf.xlu0
    %v628 = vpop.trf.xlu0
    %v629 = vpop.trf.xlu0
    %v630 = vpop.trf.xlu0
    %632 = vrot.lane.b32.xlu0 %v615, 1
    %v633 = vpop.permute.xlu0 %632
    %635 = vrot.lane.b32.xlu0 %v615, 2
    %v636 = vpop.permute.xlu0 %635
    %638 = vrot.lane.b32.xlu0 %v615, 3
    %v639 = vpop.permute.xlu0 %638
    %641 = vrot.lane.b32.xlu0 %v615, 4
    %v642 = vpop.permute.xlu0 %641
    %644 = vrot.lane.b32.xlu0 %v615, 5
    %v645 = vpop.permute.xlu0 %644
    %647 = vrot.lane.b32.xlu0 %v615, 6
    %v648 = vpop.permute.xlu0 %647
    %v650 = vsel %vm100, %v615, %v633
    %v651 = vsel %vm102, %v650, %v636
    %v652 = vsel %vm104, %v651, %v639
    %v653 = vsel %vm106, %v652, %v642
    %v654 = vsel %vm108, %v653, %v645
    %v655 = vsel %vm110, %v654, %v648
    %656 = vrot.lane.b32.xlu0 %v615, 125
    %v657 = vpop.permute.xlu0 %656
    %659 = vrot.lane.b32.xlu0 %v615, 127
    %v660 = vpop.permute.xlu0 %659
    %662 = vrot.lane.b32.xlu0 %v615, 7
    %v663 = vpop.permute.xlu0 %662
    %665 = vrot.lane.b32.xlu0 %v615, 9
    %v666 = vpop.permute.xlu0 %665
    %v668 = vsel %vm100, %v657, %v660
    %v669 = vsel %vm102, %v668, %v633
    %v670 = vsel %vm104, %v669, %v639
    %v671 = vsel %vm106, %v670, %v645
    %v672 = vsel %vm108, %v671, %v663
    %v673 = vsel %vm110, %v672, %v666
    %v675 = vrot.slane %v673, 4
    %v677 = vsel %vm133, %v655, %v675
    %679 = vrot.lane.b32.xlu0 %v677, 127
    %v680 = vpop.permute.xlu0 %679
    %682 = vrot.lane.b32.xlu0 %v677, 126
    %v683 = vpop.permute.xlu0 %682
    %685 = vrot.lane.b32.xlu0 %v677, 125
    %v686 = vpop.permute.xlu0 %685
    %688 = vmatprep.subr.mxu0 0.0
    %689 = vmatpush1.msra.mxu0 %v677
    %690 = vmatprep.subr.mxu0 0.0
    %691 = vmatpush1.msra.mxu0 %v680
    %692 = vmatprep.subr.mxu0 0.0
    %693 = vmatpush1.msra.mxu0 %v683
    %694 = vmatprep.subr.mxu0 0.0
    %695 = vmatpush1.msra.mxu0 %v686
    %696 = vmatprep.subr.mxu0 0.0
    %697 = vmatpush1.msra.mxu0 0.0
    %698 = vmatprep.subr.mxu0 0.0
    %699 = vmatpush1.msra.mxu0 0.0
    %700 = vmatprep.subr.mxu0 0.0
    %701 = vmatpush1.msra.mxu0 0.0
    %702 = vmatprep.subr.mxu0 0.0
    %703 = vmatpush1.msra.mxu0 0.0
    %704 = vmatprep.subr.mxu0 0.0
    %705 = vmatpush1.msra.mxu0 0.0
    %706 = vmatprep.subr.mxu0 0.0
    %707 = vmatpush1.msra.mxu0 0.0
    %708 = vmatprep.subr.mxu0 0.0
    %709 = vmatpush1.msra.mxu0 0.0
    %710 = vmatprep.subr.mxu0 0.0
    %711 = vmatpush1.msra.mxu0 0.0
    %712 = vmatprep.subr.mxu0 0.0
    %713 = vmatpush1.msra.mxu0 0.0
    %714 = vmatprep.subr.mxu0 0.0
    %715 = vmatpush1.msra.mxu0 0.0
    %716 = vmatprep.subr.mxu0 0.0
    %717 = vmatpush1.msra.mxu0 0.0
    %718 = vmatprep.subr.mxu0 0.0
    %719 = vmatpush1.msra.mxu0 0.0
    %720 = vmatprep.subr.mxu0 0.0
    %721 = vmatpush1.msra.mxu0 0.0
    %722 = vmatprep.subr.mxu0 0.0
    %723 = vmatpush1.msra.mxu0 0.0
    %724 = vmatprep.subr.mxu0 0.0
    %725 = vmatpush1.msra.mxu0 0.0
    %726 = vmatprep.subr.mxu0 0.0
    %727 = vmatpush1.msra.mxu0 0.0
    %728 = vmatprep.subr.mxu0 0.0
    %729 = vmatpush1.msra.mxu0 0.0
    %730 = vmatprep.subr.mxu0 0.0
    %731 = vmatpush1.msra.mxu0 0.0
    %732 = vmatprep.subr.mxu0 0.0
    %733 = vmatpush1.msra.mxu0 0.0
    %734 = vmatprep.subr.mxu0 0.0
    %735 = vmatpush1.msra.mxu0 0.0
    %736 = vmatprep.subr.mxu0 0.0
    %737 = vmatpush1.msra.mxu0 0.0
    %738 = vmatprep.subr.mxu0 0.0
    %739 = vmatpush1.msra.mxu0 0.0
    %740 = vmatprep.subr.mxu0 0.0
    %741 = vmatpush1.msra.mxu0 0.0
    %742 = vmatprep.subr.mxu0 0.0
    %743 = vmatpush1.msra.mxu0 0.0
    %744 = vmatprep.subr.mxu0 0.0
    %745 = vmatpush1.msra.mxu0 0.0
    %746 = vmatprep.subr.mxu0 0.0
    %747 = vmatpush1.msra.mxu0 0.0
    %748 = vmatprep.subr.mxu0 0.0
    %749 = vmatpush1.msra.mxu0 0.0
    %750 = vmatprep.subr.mxu0 0.0
    %751 = vmatpush1.msra.mxu0 0.0
    %752 = vmatprep.mubr.f32.mxu0 0.0
    %753 = vmatmul.mubr.f32.gmra.mrb[0].mxu0 %v157
    %v754 = vpop.f32.mrb[0].mxu0
    %v755 = vadd.f32 %v148, %v754
    %v756 = vpop.f32.mrb[0].mxu0
    %757 = vmatprep.mubr.f32.mxu0 0.0
    %758 = vmatmul.mubr.f32.gmra.mrb[0].mxu0 %v160
    %v759 = vpop.f32.mrb[0].mxu0
    %v760 = vadd.f32 %v153, %v759
    %v761 = vpop.f32.mrb[0].mxu0
    %762 = vdwg.mxu0
    %vm763 = vcmp.gt.f32.partialorder %v755, 0.0
    %vm764 = vcmp.gt.f32.partialorder %v760, 0.0
    %v765 = vmul.f32 %v755, 0.01
    %v766 = vmul.f32 %v760, 0.01
    %v767 = vsel %vm763, %v755, %v765
    %v768 = vsel %vm764, %v760, %v766
    %771 = vrot.lane.b32.xlu0 %v767, 127
    %v772 = vpop.permute.xlu0 %771
    %773 = vrot.lane.b32.xlu0 %v768, 127
    %v774 = vpop.permute.xlu0 %773
    %777 = vrot.lane.b32.xlu0 %v767, 126
    %v778 = vpop.permute.xlu0 %777
    %779 = vrot.lane.b32.xlu0 %v768, 126
    %v780 = vpop.permute.xlu0 %779
    %783 = vrot.lane.b32.xlu0 %v767, 125
    %v784 = vpop.permute.xlu0 %783
    %785 = vrot.lane.b32.xlu0 %v768, 125
    %v786 = vpop.permute.xlu0 %785
    %789 = vmatprep.subr.mxu0 0.0
    %790 = vmatpush1.msra.mxu0 %v767
    %791 = vmatprep.subr.mxu0 0.0
    %792 = vmatpush1.msra.mxu0 %v768
    %793 = vmatprep.subr.mxu0 0.0
    %794 = vmatpush1.msra.mxu0 %v772
    %795 = vmatprep.subr.mxu0 0.0
    %796 = vmatpush1.msra.mxu0 %v774
    %797 = vmatprep.subr.mxu0 0.0
    %798 = vmatpush1.msra.mxu0 %v778
    %799 = vmatprep.subr.mxu0 0.0
    %800 = vmatpush1.msra.mxu0 %v780
    %801 = vmatprep.subr.mxu0 0.0
    %802 = vmatpush1.msra.mxu0 %v784
    %803 = vmatprep.subr.mxu0 0.0
    %804 = vmatpush1.msra.mxu0 %v786
    %805 = vmatprep.subr.mxu0 0.0
    %806 = vmatpush1.msra.mxu0 0.0
    %807 = vmatprep.subr.mxu0 0.0
    %808 = vmatpush1.msra.mxu0 0.0
    %809 = vmatprep.subr.mxu0 0.0
    %810 = vmatpush1.msra.mxu0 0.0
    %811 = vmatprep.subr.mxu0 0.0
    %812 = vmatpush1.msra.mxu0 0.0
    %813 = vmatprep.subr.mxu0 0.0
    %814 = vmatpush1.msra.mxu0 0.0
    %815 = vmatprep.subr.mxu0 0.0
    %816 = vmatpush1.msra.mxu0 0.0
    %817 = vmatprep.subr.mxu0 0.0
    %818 = vmatpush1.msra.mxu0 0.0
    %819 = vmatprep.subr.mxu0 0.0
    %820 = vmatpush1.msra.mxu0 0.0
    %821 = vmatprep.subr.mxu0 0.0
    %822 = vmatpush1.msra.mxu0 0.0
    %823 = vmatprep.subr.mxu0 0.0
    %824 = vmatpush1.msra.mxu0 0.0
    %825 = vmatprep.subr.mxu0 0.0
    %826 = vmatpush1.msra.mxu0 0.0
    %827 = vmatprep.subr.mxu0 0.0
    %828 = vmatpush1.msra.mxu0 0.0
    %829 = vmatprep.subr.mxu0 0.0
    %830 = vmatpush1.msra.mxu0 0.0
    %831 = vmatprep.subr.mxu0 0.0
    %832 = vmatpush1.msra.mxu0 0.0
    %833 = vmatprep.subr.mxu0 0.0
    %834 = vmatpush1.msra.mxu0 0.0
    %835 = vmatprep.subr.mxu0 0.0
    %836 = vmatpush1.msra.mxu0 0.0
    %837 = vmatprep.subr.mxu0 0.0
    %838 = vmatpush1.msra.mxu0 0.0
    %839 = vmatprep.subr.mxu0 0.0
    %840 = vmatpush1.msra.mxu0 0.0
    %841 = vmatprep.subr.mxu0 0.0
    %842 = vmatpush1.msra.mxu0 0.0
    %843 = vmatprep.subr.mxu0 0.0
    %844 = vmatpush1.msra.mxu0 0.0
    %845 = vmatprep.subr.mxu0 0.0
    %846 = vmatpush1.msra.mxu0 0.0
    %847 = vmatprep.subr.mxu0 0.0
    %848 = vmatpush1.msra.mxu0 0.0
    %849 = vmatprep.subr.mxu0 0.0
    %850 = vmatpush1.msra.mxu0 0.0
    %851 = vmatprep.subr.mxu0 0.0
    %852 = vmatpush1.msra.mxu0 0.0
    %853 = vmatprep.mubr.f32.mxu0 0.0
    %854 = vmatmul.mubr.f32.gmra.mrb[0].mxu0 %v270
    %v855 = vpop.f32.mrb[0].mxu0
    %v856 = vadd.f32 %v266, %v855
    %v857 = vpop.f32.mrb[0].mxu0
    %858 = vdwg.mxu0
    %v859 = vtanh.pop %v856
    %v860 = vmul.f32 %v859, 1.442695
    %v861 = vpow.pop %v860
    %v863 = vrot.slane %v861, 4
    %v865 = vmul.f32 %v615, %v863
    %v866 = vsub.f32 %v865, %v859
    %s867 = scalar_lea.vmem [#allocation4], 4
    %868 = vst.msk [vmem:[%s867 - $0x4] sm:$0xf0] %vm350, %v866
    %870 = vrot.lane.b32.xlu0 %v866, 1
    %v871 = vpop.permute.xlu0 %870
    %873 = vrot.lane.b32.xlu0 %v866, 2
    %v874 = vpop.permute.xlu0 %873
    %876 = vrot.lane.b32.xlu0 %v866, 3
    %v877 = vpop.permute.xlu0 %876
    %879 = vrot.lane.b32.xlu0 %v866, 4
    %v880 = vpop.permute.xlu0 %879
    %882 = vrot.lane.b32.xlu0 %v866, 5
    %v883 = vpop.permute.xlu0 %882
    %885 = vrot.lane.b32.xlu0 %v866, 6
    %v886 = vpop.permute.xlu0 %885
    %v888 = vsel %vm100, %v866, %v871
    %v889 = vsel %vm102, %v888, %v874
    %v890 = vsel %vm104, %v889, %v877
    %v891 = vsel %vm106, %v890, %v880
    %v892 = vsel %vm108, %v891, %v883
    %v893 = vsel %vm110, %v892, %v886
    %v895 = vrot.slane %v893, 4
    %897 = vrot.lane.b32.xlu0 %v893, 127
    %v898 = vpop.permute.xlu0 %897
    %900 = vrot.lane.b32.xlu0 %v895, 126
    %v901 = vpop.permute.xlu0 %900
    %903 = vrot.lane.b32.xlu0 %v893, 125
    %v904 = vpop.permute.xlu0 %903
    %v906 = vsel %vm133, %v895, %v898
    %v907 = vsel %vm133, %v901, %v904
    %908 = vmatprep.subr.mxu0 0.0
    %909 = vmatpush1.msra.mxu0 %v906
    %910 = vmatprep.subr.mxu0 0.0
    %911 = vmatpush1.msra.mxu0 %v907
    %912 = vmatprep.subr.mxu0 0.0
    %913 = vmatpush1.msra.mxu0 0.0
    %914 = vmatprep.subr.mxu0 0.0
    %915 = vmatpush1.msra.mxu0 0.0
    %916 = vmatprep.subr.mxu0 0.0
    %917 = vmatpush1.msra.mxu0 0.0
    %918 = vmatprep.subr.mxu0 0.0
    %919 = vmatpush1.msra.mxu0 0.0
    %920 = vmatprep.subr.mxu0 0.0
    %921 = vmatpush1.msra.mxu0 0.0
    %922 = vmatprep.subr.mxu0 0.0
    %923 = vmatpush1.msra.mxu0 0.0
    %924 = vmatprep.subr.mxu0 0.0
    %925 = vmatpush1.msra.mxu0 0.0
    %926 = vmatprep.subr.mxu0 0.0
    %927 = vmatpush1.msra.mxu0 0.0
    %928 = vmatprep.subr.mxu0 0.0
    %929 = vmatpush1.msra.mxu0 0.0
    %930 = vmatprep.subr.mxu0 0.0
    %931 = vmatpush1.msra.mxu0 0.0
    %932 = vmatprep.subr.mxu0 0.0
    %933 = vmatpush1.msra.mxu0 0.0
    %934 = vmatprep.subr.mxu0 0.0
    %935 = vmatpush1.msra.mxu0 0.0
    %936 = vmatprep.subr.mxu0 0.0
    %937 = vmatpush1.msra.mxu0 0.0
    %938 = vmatprep.subr.mxu0 0.0
    %939 = vmatpush1.msra.mxu0 0.0
    %940 = vmatprep.subr.mxu0 0.0
    %941 = vmatpush1.msra.mxu0 0.0
    %942 = vmatprep.subr.mxu0 0.0
    %943 = vmatpush1.msra.mxu0 0.0
    %944 = vmatprep.subr.mxu0 0.0
    %945 = vmatpush1.msra.mxu0 0.0
    %946 = vmatprep.subr.mxu0 0.0
    %947 = vmatpush1.msra.mxu0 0.0
    %948 = vmatprep.subr.mxu0 0.0
    %949 = vmatpush1.msra.mxu0 0.0
    %950 = vmatprep.subr.mxu0 0.0
    %951 = vmatpush1.msra.mxu0 0.0
    %952 = vmatprep.subr.mxu0 0.0
    %953 = vmatpush1.msra.mxu0 0.0
    %954 = vmatprep.subr.mxu0 0.0
    %955 = vmatpush1.msra.mxu0 0.0
    %956 = vmatprep.subr.mxu0 0.0
    %957 = vmatpush1.msra.mxu0 0.0
    %958 = vmatprep.subr.mxu0 0.0
    %959 = vmatpush1.msra.mxu0 0.0
    %960 = vmatprep.subr.mxu0 0.0
    %961 = vmatpush1.msra.mxu0 0.0
    %962 = vmatprep.subr.mxu0 0.0
    %963 = vmatpush1.msra.mxu0 0.0
    %964 = vmatprep.subr.mxu0 0.0
    %965 = vmatpush1.msra.mxu0 0.0
    %966 = vmatprep.subr.mxu0 0.0
    %967 = vmatpush1.msra.mxu0 0.0
    %968 = vmatprep.subr.mxu0 0.0
    %969 = vmatpush1.msra.mxu0 0.0
    %970 = vmatprep.subr.mxu0 0.0
    %971 = vmatpush1.msra.mxu0 0.0
    %972 = vmatprep.mubr.f32.mxu0 0.0
    %973 = vmatmul.mubr.f32.gmra.mrb[0].mxu0 %v403
    %v974 = vpop.f32.mrb[0].mxu0
    %v975 = vadd.f32 %v394, %v974
    %v976 = vpop.f32.mrb[0].mxu0
    %977 = vmatprep.mubr.f32.mxu0 0.0
    %978 = vmatmul.mubr.f32.gmra.mrb[0].mxu0 %v406
    %v979 = vpop.f32.mrb[0].mxu0
    %v980 = vadd.f32 %v399, %v979
    %v981 = vpop.f32.mrb[0].mxu0
    %982 = vdwg.mxu0
    %vm983 = vcmp.gt.f32.partialorder %v975, 0.0
    %vm984 = vcmp.gt.f32.partialorder %v980, 0.0
    %v985 = vmul.f32 %v975, 0.01
    %v986 = vmul.f32 %v980, 0.01
    %v987 = vsel %vm983, %v975, %v985
    %v988 = vsel %vm984, %v980, %v986
    %991 = vrot.lane.b32.xlu0 %v987, 127
    %v992 = vpop.permute.xlu0 %991
    %993 = vrot.lane.b32.xlu0 %v988, 127
    %v994 = vpop.permute.xlu0 %993
    %997 = vrot.lane.b32.xlu0 %v987, 126
    %v998 = vpop.permute.xlu0 %997
    %999 = vrot.lane.b32.xlu0 %v988, 126
    %v1000 = vpop.permute.xlu0 %999
    %1003 = vrot.lane.b32.xlu0 %v987, 125
    %v1004 = vpop.permute.xlu0 %1003
    %1005 = vrot.lane.b32.xlu0 %v988, 125
    %v1006 = vpop.permute.xlu0 %1005
    %1009 = vmatprep.subr.mxu0 0.0
    %1010 = vmatpush1.msra.mxu0 %v987
    %1011 = vmatprep.subr.mxu0 0.0
    %1012 = vmatpush1.msra.mxu0 %v988
    %1013 = vmatprep.subr.mxu0 0.0
    %1014 = vmatpush1.msra.mxu0 %v992
    %1015 = vmatprep.subr.mxu0 0.0
    %1016 = vmatpush1.msra.mxu0 %v994
    %1017 = vmatprep.subr.mxu0 0.0
    %1018 = vmatpush1.msra.mxu0 %v998
    %1019 = vmatprep.subr.mxu0 0.0
    %1020 = vmatpush1.msra.mxu0 %v1000
    %1021 = vmatprep.subr.mxu0 0.0
    %1022 = vmatpush1.msra.mxu0 %v1004
    %1023 = vmatprep.subr.mxu0 0.0
    %1024 = vmatpush1.msra.mxu0 %v1006
    %1025 = vmatprep.subr.mxu0 0.0
    %1026 = vmatpush1.msra.mxu0 0.0
    %1027 = vmatprep.subr.mxu0 0.0
    %1028 = vmatpush1.msra.mxu0 0.0
    %1029 = vmatprep.subr.mxu0 0.0
    %1030 = vmatpush1.msra.mxu0 0.0
    %1031 = vmatprep.subr.mxu0 0.0
    %1032 = vmatpush1.msra.mxu0 0.0
    %1033 = vmatprep.subr.mxu0 0.0
    %1034 = vmatpush1.msra.mxu0 0.0
    %1035 = vmatprep.subr.mxu0 0.0
    %1036 = vmatpush1.msra.mxu0 0.0
    %1037 = vmatprep.subr.mxu0 0.0
    %1038 = vmatpush1.msra.mxu0 0.0
    %1039 = vmatprep.subr.mxu0 0.0
    %1040 = vmatpush1.msra.mxu0 0.0
    %1041 = vmatprep.subr.mxu0 0.0
    %1042 = vmatpush1.msra.mxu0 0.0
    %1043 = vmatprep.subr.mxu0 0.0
    %1044 = vmatpush1.msra.mxu0 0.0
    %1045 = vmatprep.subr.mxu0 0.0
    %1046 = vmatpush1.msra.mxu0 0.0
    %1047 = vmatprep.subr.mxu0 0.0
    %1048 = vmatpush1.msra.mxu0 0.0
    %1049 = vmatprep.subr.mxu0 0.0
    %1050 = vmatpush1.msra.mxu0 0.0
    %1051 = vmatprep.subr.mxu0 0.0
    %1052 = vmatpush1.msra.mxu0 0.0
    %1053 = vmatprep.subr.mxu0 0.0
    %1054 = vmatpush1.msra.mxu0 0.0
    %1055 = vmatprep.subr.mxu0 0.0
    %1056 = vmatpush1.msra.mxu0 0.0
    %1057 = vmatprep.subr.mxu0 0.0
    %1058 = vmatpush1.msra.mxu0 0.0
    %1059 = vmatprep.subr.mxu0 0.0
    %1060 = vmatpush1.msra.mxu0 0.0
    %1061 = vmatprep.subr.mxu0 0.0
    %1062 = vmatpush1.msra.mxu0 0.0
    %1063 = vmatprep.subr.mxu0 0.0
    %1064 = vmatpush1.msra.mxu0 0.0
    %1065 = vmatprep.subr.mxu0 0.0
    %1066 = vmatpush1.msra.mxu0 0.0
    %1067 = vmatprep.subr.mxu0 0.0
    %1068 = vmatpush1.msra.mxu0 0.0
    %1069 = vmatprep.subr.mxu0 0.0
    %1070 = vmatpush1.msra.mxu0 0.0
    %1071 = vmatprep.subr.mxu0 0.0
    %1072 = vmatpush1.msra.mxu0 0.0
    %1073 = vmatprep.mubr.f32.mxu0 0.0
    %1074 = vmatmul.mubr.f32.gmra.mrb[0].mxu0 %v515
    %v1075 = vpop.f32.mrb[0].mxu0
    %v1076 = vadd.f32 %v512, %v1075
    %v1077 = vpop.f32.mrb[0].mxu0
    %1078 = vdwg.mxu0
    %v1079 = vtanh.pop %v1076
    %v1080 = vmul.f32 %v1079, 1.442695
    %v1081 = vpow.pop %v1080
    %v1082 = vmul.f32 %v615, %v1081
    %v1084 = vrot.slane %v1079, 4
    %v1086 = vadd.f32 %v1082, %v1084
    %s1087 = scalar_lea.vmem [#allocation2], 4
    %1088 = vst.msk [vmem:[%s1087] sm:$0xf] %vm595, %v1086
    // Predicated region
    $region38: #{lifting_scheme_forward.1} parent=1 // pred_check
      _
    $region39: #{lifting_scheme_forward.1} parent=1 // pred_check_branch
      %1090 = sbr.rel (0) target = $region41
    $region40: #{lifting_scheme_forward.1} parent=1 // pred_region
      %s1092 = ssub.s32 128, 128
      %1093 = vsyncadd [#allocation3], %s1092
      %s1094 = sshll.u32 [#allocation2], 4
      %s1095 = int_to_ptr.vmem [resolvable:$true] %s1094
      %1100 = dma.vmem_to_hbm [thread:$0]  %s1095, 128, %s9, [#allocation3], 64, 64, 4
    $region41: #{lifting_scheme_forward.1} parent=1 // pred_fallthru
      _
    // Predicated region
    $region42: #{lifting_scheme_forward.1} parent=1 // pred_check
      _
    $region43: #{lifting_scheme_forward.1} parent=1 // pred_check_branch
      %1102 = sbr.rel (0) target = $region45
    $region44: #{lifting_scheme_forward.1} parent=1 // pred_region
      %s1104 = ssub.s32 128, 128
      %1105 = vsyncadd [#allocation5], %s1104
      %s1106 = sshll.u32 [#allocation4], 4
      %s1107 = int_to_ptr.vmem [resolvable:$true] %s1106
      %1112 = dma.vmem_to_hbm [thread:$0]  %s1107, 128, %s10, [#allocation5], 64, 64, 4
    $region45: #{lifting_scheme_forward.1} parent=1 // pred_fallthru
      _
    // Predicated region
    $region46: #{lifting_scheme_forward.1} parent=1 // pred_check
      _
    $region47: #{lifting_scheme_forward.1} parent=1 // pred_check_branch
      %1114 = sbr.rel (0) target = $region49
    $region48: #{lifting_scheme_forward.1} parent=1 // pred_region
      %1115 = dma.done [#allocation3], 128
    $region49: #{lifting_scheme_forward.1} parent=1 // pred_fallthru
      _
    // Predicated region
    $region50: #{lifting_scheme_forward.1} parent=1 // pred_check
      _
    $region51: #{lifting_scheme_forward.1} parent=1 // pred_check_branch
      %1117 = sbr.rel (0) target = $region53
    $region52: #{lifting_scheme_forward.1} parent=1 // pred_region
      %1118 = dma.done [#allocation5], 128
    $region53: #{lifting_scheme_forward.1} parent=1 // pred_fallthru
      _
    %1119 = vsyncpa [#allocation3], 1
    %1120 = vsyncpa [#allocation5], 1

</llo_original>
